<compile_context>
chip_gen: v5e
topology: v5e:2x2
jax: 0.10.0
libtpu: 0.0.40
codegen_flags: <defaults>
</compile_context>

<pallas_src>
import math

import jax
import jax.numpy as jnp
from jax.experimental import pallas as pl
from jax.experimental.pallas import tpu as pltpu

# ----------------------------- configuration --------------------------------
B = 2
MAX_SEQ_LEN = 8          # module default is 77; small demo shape
VOCAB_SIZE = 1000        # module default is 30522; synthetic vocab
N_EMBED = 128            # n_embed (lane-dense demo size)
N_LAYER = 2              # n_layer
HEADS = 2                # x-transformers Encoder default heads=8; scaled down
DIM_HEAD = 64            # x-transformers default dim_head
INNER_DIM = HEADS * DIM_HEAD      # 128
FF_INNER = N_EMBED * 4            # FeedForward mult = 4
LN_EPS = 1e-5
ATTN_SCALE = DIM_HEAD ** -0.5


def _gelu_tanh(x):
    # tanh-approx GELU: transcendental goes to the EUP slot instead of a
    # ~12-op VALU erf polynomial. Matches exact nn.GELU() to ~1e-3.
    c = math.sqrt(2.0 / math.pi)
    return 0.5 * x * (1.0 + jnp.tanh(c * (x + 0.044715 * x * x * x)))


def _layer_norm(v, g, b):
    mu = jnp.mean(v, axis=-1, keepdims=True)
    var = jnp.mean(jnp.square(v - mu), axis=-1, keepdims=True)
    return (v - mu) * jax.lax.rsqrt(var + LN_EPS) * g + b


# ------------------------------- kernel -------------------------------------
def layer_kernel(x_ref, vecs_ref, b1_ref, wqkv_ref, wo_ref, w1_ref, w2_ref,
                 lnf_ref, out_ref):
    """One (batch element, layer) grid step of the transformer stack.

    grid = (B, N_LAYER); dims = ("parallel", "arbitrary").

    x_ref    : (S, D)  f32   token+pos embeddings for this batch element
    vecs_ref : (6, D)  f32   packed [ln1_g, ln1_b, attn_out_bias,
                                     ln2_g, ln2_b, ffn_b2] for this layer
    b1_ref   : (1, FF) f32   FFN first bias for this layer
    wqkv_ref : (D, 3*INNER_DIM) bf16  fused [Wq | Wk | Wv] (head-major inside)
    wo_ref   : (INNER_DIM, D)   bf16  attention output projection
    w1_ref   : (D, FF)          bf16
    w2_ref   : (FF, D)          bf16
    lnf_ref  : (2, D)  f32   packed [lnf_g, lnf_b]
    out_ref  : (S, D)  f32   activation, VMEM-resident across the layer axis
    """
    l = pl.program_id(1)
    last = pl.num_programs(1) - 1

    # Seed the resident activation from the embeddings on the first layer step.
    @pl.when(l == 0)
    def _():
        out_ref[...] = x_ref[...]

    x = out_ref[...]                              # (S, D) f32

    vecs = vecs_ref[...]                          # (6, D) f32
    ln1_g, ln1_b = vecs[0:1], vecs[1:2]
    attn_bias = vecs[2:3]
    ln2_g, ln2_b = vecs[3:4], vecs[4:5]
    ffn_b2 = vecs[5:6]
    ffn_b1 = b1_ref[...]                          # (1, FF) f32

    # ---- pre-norm multi-head self-attention + residual ----
    h = _layer_norm(x, ln1_g, ln1_b)
    h_bf = h.astype(jnp.bfloat16)

    # Single wide QKV projection: (S, D) @ (D, 3*INNER_DIM) -> (S, 3*INNER_DIM)
    qkv = jnp.dot(h_bf, wqkv_ref[...], preferred_element_type=jnp.float32)

    head_outs = []
    for hd in range(HEADS):                       # static unroll, static slices
        q = qkv[:, hd * DIM_HEAD:(hd + 1) * DIM_HEAD]
        k = qkv[:, INNER_DIM + hd * DIM_HEAD:INNER_DIM + (hd + 1) * DIM_HEAD]
        v = qkv[:, 2 * INNER_DIM + hd * DIM_HEAD:2 * INNER_DIM + (hd + 1) * DIM_HEAD]
        q_bf = q.astype(jnp.bfloat16)
        k_bf = k.astype(jnp.bfloat16)
        v_bf = v.astype(jnp.bfloat16)

        dots = jnp.einsum('qd,kd->qk', q_bf, k_bf,
                          preferred_element_type=jnp.float32) * ATTN_SCALE
        dots = dots - jnp.max(dots, axis=-1, keepdims=True)
        e = jnp.exp(dots)
        attn = e * pl.reciprocal(jnp.sum(e, axis=-1, keepdims=True), approx=True)
        oh = jnp.dot(attn.astype(jnp.bfloat16), v_bf,
                     preferred_element_type=jnp.float32)   # (S, DIM_HEAD) f32
        head_outs.append(oh)

    o = jnp.concatenate(head_outs, axis=-1)       # (S, INNER_DIM), lane-dense
    attn_out = jnp.dot(o.astype(jnp.bfloat16), wo_ref[...],
                       preferred_element_type=jnp.float32) + attn_bias
    x = x + attn_out

    # ---- pre-norm FeedForward (Linear -> GELU -> Linear) + residual ----
    h = _layer_norm(x, ln2_g, ln2_b)
    f = jnp.dot(h.astype(jnp.bfloat16), w1_ref[...],
                preferred_element_type=jnp.float32) + ffn_b1
    f = _gelu_tanh(f)
    f = jnp.dot(f.astype(jnp.bfloat16), w2_ref[...],
                preferred_element_type=jnp.float32) + ffn_b2
    x = x + f

    out_ref[...] = x

    # ---- final LayerNorm on the last layer step ----
    @pl.when(l == last)
    def _():
        lnf = lnf_ref[...]                        # (2, D)
        out_ref[...] = _layer_norm(x, lnf[0:1], lnf[1:2])


# ------------------------------ wrapper --------------------------------------
@jax.jit
def bert_embedder_forward(tokens, params):
    # Glue: embedding gathers. emb_dropout(p=0.0) and project_emb=Identity are no-ops.
    x = params['token_emb'][tokens] + params['pos_emb'][None, :tokens.shape[1], :]
    x = x.astype(jnp.float32)                     # (B, S, D)
    Bq, S, D = x.shape

    out = pl.pallas_call(
        layer_kernel,
        out_shape=jax.ShapeDtypeStruct((Bq, S, D), jnp.float32),
        grid_spec=pltpu.PrefetchScalarGridSpec(
            num_scalar_prefetch=0,
            grid=(Bq, N_LAYER),
            in_specs=[
                # activation (per batch element, read at l == 0 only)
                pl.BlockSpec((None, S, D), lambda b, l: (b, 0, 0)),
                # per-layer packed small vectors + biases
                pl.BlockSpec((None, 6, D), lambda b, l: (l, 0, 0)),
                pl.BlockSpec((None, 1, FF_INNER), lambda b, l: (l, 0, 0)),
                # per-layer weights (double-buffered by the pipeline)
                pl.BlockSpec((None, D, 3 * INNER_DIM), lambda b, l: (l, 0, 0)),
                pl.BlockSpec((None, INNER_DIM, D), lambda b, l: (l, 0, 0)),
                pl.BlockSpec((None, D, FF_INNER), lambda b, l: (l, 0, 0)),
                pl.BlockSpec((None, FF_INNER, D), lambda b, l: (l, 0, 0)),
                # final layer norm params
                pl.BlockSpec((2, D), lambda b, l: (0, 0)),
            ],
            # activation resident in VMEM across the layer ("arbitrary") axis
            out_specs=pl.BlockSpec((None, S, D), lambda b, l: (b, 0, 0)),
        ),
        compiler_params=pltpu.CompilerParams(
            dimension_semantics=("parallel", "arbitrary"),
            vmem_limit_bytes=32 * 1024 * 1024,
        ),
    )(x, params['vecs'], params['b1'], params['wqkv'], params['wo'],
      params['w1'], params['w2'], params['lnf'])
    return out


def init_params(key):
    def nrm(k, shape, scale=0.02, dtype=jnp.bfloat16):
        return (jax.random.normal(k, shape, dtype=jnp.float32) * scale).astype(dtype)

    ks = iter(jax.random.split(key, 8))
    L, D, I, F = N_LAYER, N_EMBED, INNER_DIM, FF_INNER
    ones = lambda *s: jnp.ones(s, jnp.float32)
    zeros = lambda *s: jnp.zeros(s, jnp.float32)

    # Packed per-layer (1, D)-wide vectors:
    # [ln1_g, ln1_b, attn_out_bias, ln2_g, ln2_b, ffn_b2] -> (L, 6, D)
    vecs = jnp.stack([ones(L, D), zeros(L, D), zeros(L, D),
                      ones(L, D), zeros(L, D), zeros(L, D)], axis=1)

    # Fused QKV projection weights: (L, D, 3*INNER_DIM), [Wq | Wk | Wv],
    # head-major within each INNER_DIM-wide slab.
    wq = nrm(next(ks), (L, D, I))
    wk = nrm(next(ks), (L, D, I))
    wv = nrm(next(ks), (L, D, I))
    wqkv = jnp.concatenate([wq, wk, wv], axis=-1)

    return dict(
        token_emb=nrm(next(ks), (VOCAB_SIZE, D), dtype=jnp.float32),
        pos_emb=nrm(next(ks), (MAX_SEQ_LEN, D), dtype=jnp.float32),
        vecs=vecs,
        b1=zeros(L, 1, F),
        wqkv=wqkv,
        wo=nrm(next(ks), (L, I, D)),
        w1=nrm(next(ks), (L, D, F)),
        w2=nrm(next(ks), (L, F, D)),
        lnf=jnp.stack([ones(D), zeros(D)], axis=0),
    )


if __name__ == "__main__":
    key = jax.random.PRNGKey(0)
    pkey, tkey = jax.random.split(key)
    params = init_params(pkey)
    tokens = jax.random.randint(tkey, (B, MAX_SEQ_LEN), 0, VOCAB_SIZE,
                                dtype=jnp.int32)
    z = bert_embedder_forward(tokens, params)
    jax.block_until_ready(z)
    assert z.shape == (B, MAX_SEQ_LEN, N_EMBED)
    assert z.dtype == jnp.float32
    assert bool(jnp.all(jnp.isfinite(z)))
    print("KERNEL_OK")
</pallas_src>

<mosaic_0001>
module attributes {stable_mosaic.version = 11 : i64} {
  func.func @layer_kernel(%arg0: i32, %arg1: i32, %arg2: memref<1x8x128xf32, #tpu.memory_space<vmem>>, %arg3: memref<1x6x128xf32, #tpu.memory_space<vmem>>, %arg4: memref<1x1x512xf32, #tpu.memory_space<vmem>>, %arg5: memref<1x128x384xbf16, #tpu.memory_space<vmem>>, %arg6: memref<1x128x128xbf16, #tpu.memory_space<vmem>>, %arg7: memref<1x128x512xbf16, #tpu.memory_space<vmem>>, %arg8: memref<1x512x128xbf16, #tpu.memory_space<vmem>>, %arg9: memref<2x128xf32, #tpu.memory_space<vmem>>, %arg10: memref<1x8x128xf32, #tpu.memory_space<vmem>>) attributes {dimension_semantics = [#tpu.dimension_semantics<parallel>, #tpu.dimension_semantics<arbitrary>], iteration_bounds = array<i64: 2, 2>, scalar_prefetch = 0 : i64, scratch_operands = 0 : i64, tpu.core_type = #tpu.core_type<tc>, window_params = [{transform_indices = @transform_0, window_bounds = array<i64: 1, 8, 128>}, {transform_indices = @transform_1, window_bounds = array<i64: 1, 6, 128>}, {transform_indices = @transform_2, window_bounds = array<i64: 1, 1, 512>}, {transform_indices = @transform_3, window_bounds = array<i64: 1, 128, 384>}, {transform_indices = @transform_4, window_bounds = array<i64: 1, 128, 128>}, {transform_indices = @transform_5, window_bounds = array<i64: 1, 128, 512>}, {transform_indices = @transform_6, window_bounds = array<i64: 1, 512, 128>}, {pipeline_mode = #tpu.pipeline_mode<synchronous>, transform_indices = @transform_7, window_bounds = array<i64: 2, 128>}, {transform_indices = @transform_8, window_bounds = array<i64: 1, 8, 128>}]} {
    %c0_i32 = arith.constant 0 : i32
    %0 = arith.cmpi eq, %arg1, %c0_i32 : i32
    %1 = arith.extui %0 : i1 to i32
    %c0_i32_0 = arith.constant 0 : i32
    %2 = arith.cmpi ne, %1, %c0_i32_0 : i32
    scf.if %2 {
      %c0_52 = arith.constant 0 : index
      %c0_53 = arith.constant 0 : index
      %c0_54 = arith.constant 0 : index
      %145 = vector.load %arg2[%c0_52, %c0_53, %c0_54] : memref<1x8x128xf32, #tpu.memory_space<vmem>>, vector<1x8x128xf32>
      %146 = vector.shape_cast %145 : vector<1x8x128xf32> to vector<8x128xf32>
      %c0_55 = arith.constant 0 : index
      %c0_56 = arith.constant 0 : index
      %c0_57 = arith.constant 0 : index
      %147 = vector.load %arg10[%c0_55, %c0_56, %c0_57] : memref<1x8x128xf32, #tpu.memory_space<vmem>>, vector<1x8x128xf32>
      %148 = vector.shape_cast %147 : vector<1x8x128xf32> to vector<8x128xf32>
      %149 = vector.shape_cast %146 : vector<8x128xf32> to vector<1x8x128xf32>
      tpu.vector_store %arg10[%c0_55, %c0_56, %c0_57], %149 {strides = array<i32>} : memref<1x8x128xf32, #tpu.memory_space<vmem>>, vector<1x8x128xf32>,
    } else {
    }
    %c0 = arith.constant 0 : index
    %c0_1 = arith.constant 0 : index
    %c0_2 = arith.constant 0 : index
    %3 = vector.load %arg10[%c0, %c0_1, %c0_2] : memref<1x8x128xf32, #tpu.memory_space<vmem>>, vector<1x8x128xf32>
    %4 = vector.shape_cast %3 : vector<1x8x128xf32> to vector<8x128xf32>
    %c0_3 = arith.constant 0 : index
    %c0_4 = arith.constant 0 : index
    %c0_5 = arith.constant 0 : index
    %5 = vector.load %arg3[%c0_3, %c0_4, %c0_5] : memref<1x6x128xf32, #tpu.memory_space<vmem>>, vector<1x6x128xf32>
    %6 = vector.shape_cast %5 : vector<1x6x128xf32> to vector<6x128xf32>
    %7 = vector.extract_strided_slice %6 {offsets = [0, 0], sizes = [1, 128], strides = [1, 1]} : vector<6x128xf32> to vector<1x128xf32>
    %8 = vector.extract_strided_slice %6 {offsets = [1, 0], sizes = [1, 128], strides = [1, 1]} : vector<6x128xf32> to vector<1x128xf32>
    %9 = vector.extract_strided_slice %6 {offsets = [2, 0], sizes = [1, 128], strides = [1, 1]} : vector<6x128xf32> to vector<1x128xf32>
    %10 = vector.extract_strided_slice %6 {offsets = [3, 0], sizes = [1, 128], strides = [1, 1]} : vector<6x128xf32> to vector<1x128xf32>
    %11 = vector.extract_strided_slice %6 {offsets = [4, 0], sizes = [1, 128], strides = [1, 1]} : vector<6x128xf32> to vector<1x128xf32>
    %12 = vector.extract_strided_slice %6 {offsets = [5, 0], sizes = [1, 128], strides = [1, 1]} : vector<6x128xf32> to vector<1x128xf32>
    %c0_6 = arith.constant 0 : index
    %c0_7 = arith.constant 0 : index
    %c0_8 = arith.constant 0 : index
    %13 = vector.load %arg4[%c0_6, %c0_7, %c0_8] : memref<1x1x512xf32, #tpu.memory_space<vmem>>, vector<1x1x512xf32>
    %14 = vector.shape_cast %13 : vector<1x1x512xf32> to vector<1x512xf32>
    %cst = arith.constant dense<0.000000e+00> : vector<8xf32>
    %15 = vector.multi_reduction <add>, %4, %cst [1] : vector<8x128xf32> to vector<8xf32>
    %16 = vector.shape_cast %15 : vector<8xf32> to vector<8x1xf32>
    %cst_9 = arith.constant 1.280000e+02 : f32
    %17 = vector.broadcast %cst_9 : f32 to vector<8x1xf32>
    %18 = arith.divf %16, %17 : vector<8x1xf32>
    %19 = vector.broadcast %18 : vector<8x1xf32> to vector<8x128xf32>
    %20 = arith.subf %4, %19 : vector<8x128xf32>
    %21 = arith.mulf %20, %20 : vector<8x128xf32>
    %cst_10 = arith.constant dense<0.000000e+00> : vector<8xf32>
    %22 = vector.multi_reduction <add>, %21, %cst_10 [1] : vector<8x128xf32> to vector<8xf32>
    %23 = vector.shape_cast %22 : vector<8xf32> to vector<8x1xf32>
    %cst_11 = arith.constant 1.280000e+02 : f32
    %24 = vector.broadcast %cst_11 : f32 to vector<8x1xf32>
    %25 = arith.divf %23, %24 : vector<8x1xf32>
    %26 = vector.broadcast %18 : vector<8x1xf32> to vector<8x128xf32>
    %27 = arith.subf %4, %26 : vector<8x128xf32>
    %cst_12 = arith.constant 9.99999974E-6 : f32
    %28 = vector.broadcast %cst_12 : f32 to vector<8x1xf32>
    %29 = arith.addf %25, %28 : vector<8x1xf32>
    %30 = math.rsqrt %29 : vector<8x1xf32>
    %31 = vector.broadcast %30 : vector<8x1xf32> to vector<8x128xf32>
    %32 = arith.mulf %27, %31 : vector<8x128xf32>
    %33 = vector.broadcast %7 : vector<1x128xf32> to vector<8x128xf32>
    %34 = arith.mulf %32, %33 : vector<8x128xf32>
    %35 = vector.broadcast %8 : vector<1x128xf32> to vector<8x128xf32>
    %36 = arith.addf %34, %35 : vector<8x128xf32>
    %37 = arith.truncf %36 : vector<8x128xf32> to vector<8x128xbf16>
    %c0_13 = arith.constant 0 : index
    %c0_14 = arith.constant 0 : index
    %c0_15 = arith.constant 0 : index
    %38 = vector.load %arg5[%c0_13, %c0_14, %c0_15] : memref<1x128x384xbf16, #tpu.memory_space<vmem>>, vector<1x128x384xbf16>
    %39 = vector.shape_cast %38 : vector<1x128x384xbf16> to vector<128x384xbf16>
    %cst_16 = arith.constant dense<0.000000e+00> : vector<8x384xf32>
    %40 = tpu.matmul %37, %39, %cst_16 {dimension_numbers = #tpu.dot_dimension_numbers<[1], [0], [0], [1], [0, 0, 1, 1], [], []>} : vector<8x128xbf16>, vector<128x384xbf16>, vector<8x384xf32> -> vector<8x384xf32>
    %41 = vector.extract_strided_slice %40 {offsets = [0, 0], sizes = [8, 64], strides = [1, 1]} : vector<8x384xf32> to vector<8x64xf32>
    %42 = vector.extract_strided_slice %40 {offsets = [0, 128], sizes = [8, 64], strides = [1, 1]} : vector<8x384xf32> to vector<8x64xf32>
    %43 = vector.extract_strided_slice %40 {offsets = [0, 256], sizes = [8, 64], strides = [1, 1]} : vector<8x384xf32> to vector<8x64xf32>
    %44 = arith.truncf %41 : vector<8x64xf32> to vector<8x64xbf16>
    %45 = arith.truncf %42 : vector<8x64xf32> to vector<8x64xbf16>
    %46 = arith.truncf %43 : vector<8x64xf32> to vector<8x64xbf16>
    "tpu.trace_start"() <{level = 10 : i32, message = "qd,kd->qk"}> : () -> ()
    %cst_17 = arith.constant dense<0.000000e+00> : vector<8x8xf32>
    %47 = tpu.matmul %44, %45, %cst_17 {dimension_numbers = #tpu.dot_dimension_numbers<[1], [1], [0], [0], [0, 0, 1, 0], [], []>} : vector<8x64xbf16>, vector<8x64xbf16>, vector<8x8xf32> -> vector<8x8xf32>
    "tpu.trace_stop"() : () -> ()
    %cst_18 = arith.constant 1.250000e-01 : f32
    %48 = vector.broadcast %cst_18 : f32 to vector<8x8xf32>
    %49 = arith.mulf %47, %48 : vector<8x8xf32>
    %cst_19 = arith.constant dense<0xFF800000> : vector<8xf32>
    %50 = vector.multi_reduction <maximumf>, %49, %cst_19 [1] : vector<8x8xf32> to vector<8xf32>
    %51 = vector.shape_cast %50 : vector<8xf32> to vector<8x1xf32>
    %52 = vector.broadcast %51 : vector<8x1xf32> to vector<8x8xf32>
    %53 = arith.subf %49, %52 : vector<8x8xf32>
    %54 = math.exp %53 : vector<8x8xf32>
    %cst_20 = arith.constant dense<0.000000e+00> : vector<8xf32>
    %55 = vector.multi_reduction <add>, %54, %cst_20 [1] : vector<8x8xf32> to vector<8xf32>
    %56 = vector.shape_cast %55 : vector<8xf32> to vector<8x1xf32>
    %57 = tpu.reciprocal %56 {approx = true} : vector<8x1xf32> -> vector<8x1xf32>
    %58 = vector.broadcast %57 : vector<8x1xf32> to vector<8x8xf32>
    %59 = arith.mulf %54, %58 : vector<8x8xf32>
    %60 = arith.truncf %59 : vector<8x8xf32> to vector<8x8xbf16>
    %cst_21 = arith.constant dense<0.000000e+00> : vector<8x64xf32>
    %61 = tpu.matmul %60, %46, %cst_21 {dimension_numbers = #tpu.dot_dimension_numbers<[1], [0], [0], [1], [0, 0, 1, 1], [], []>} : vector<8x8xbf16>, vector<8x64xbf16>, vector<8x64xf32> -> vector<8x64xf32>
    %62 = vector.extract_strided_slice %40 {offsets = [0, 64], sizes = [8, 64], strides = [1, 1]} : vector<8x384xf32> to vector<8x64xf32>
    %63 = vector.extract_strided_slice %40 {offsets = [0, 192], sizes = [8, 64], strides = [1, 1]} : vector<8x384xf32> to vector<8x64xf32>
    %64 = vector.extract_strided_slice %40 {offsets = [0, 320], sizes = [8, 64], strides = [1, 1]} : vector<8x384xf32> to vector<8x64xf32>
    %65 = arith.truncf %62 : vector<8x64xf32> to vector<8x64xbf16>
    %66 = arith.truncf %63 : vector<8x64xf32> to vector<8x64xbf16>
    %67 = arith.truncf %64 : vector<8x64xf32> to vector<8x64xbf16>
    "tpu.trace_start"() <{level = 10 : i32, message = "qd,kd->qk"}> : () -> ()
    %cst_22 = arith.constant dense<0.000000e+00> : vector<8x8xf32>
    %68 = tpu.matmul %65, %66, %cst_22 {dimension_numbers = #tpu.dot_dimension_numbers<[1], [1], [0], [0], [0, 0, 1, 0], [], []>} : vector<8x64xbf16>, vector<8x64xbf16>, vector<8x8xf32> -> vector<8x8xf32>
    "tpu.trace_stop"() : () -> ()
    %cst_23 = arith.constant 1.250000e-01 : f32
    %69 = vector.broadcast %cst_23 : f32 to vector<8x8xf32>
    %70 = arith.mulf %68, %69 : vector<8x8xf32>
    %cst_24 = arith.constant dense<0xFF800000> : vector<8xf32>
    %71 = vector.multi_reduction <maximumf>, %70, %cst_24 [1] : vector<8x8xf32> to vector<8xf32>
    %72 = vector.shape_cast %71 : vector<8xf32> to vector<8x1xf32>
    %73 = vector.broadcast %72 : vector<8x1xf32> to vector<8x8xf32>
    %74 = arith.subf %70, %73 : vector<8x8xf32>
    %75 = math.exp %74 : vector<8x8xf32>
    %cst_25 = arith.constant dense<0.000000e+00> : vector<8xf32>
    %76 = vector.multi_reduction <add>, %75, %cst_25 [1] : vector<8x8xf32> to vector<8xf32>
    %77 = vector.shape_cast %76 : vector<8xf32> to vector<8x1xf32>
    %78 = tpu.reciprocal %77 {approx = true} : vector<8x1xf32> -> vector<8x1xf32>
    %79 = vector.broadcast %78 : vector<8x1xf32> to vector<8x8xf32>
    %80 = arith.mulf %75, %79 : vector<8x8xf32>
    %81 = arith.truncf %80 : vector<8x8xf32> to vector<8x8xbf16>
    %cst_26 = arith.constant dense<0.000000e+00> : vector<8x64xf32>
    %82 = tpu.matmul %81, %67, %cst_26 {dimension_numbers = #tpu.dot_dimension_numbers<[1], [0], [0], [1], [0, 0, 1, 1], [], []>} : vector<8x8xbf16>, vector<8x64xbf16>, vector<8x64xf32> -> vector<8x64xf32>
    %83 = tpu.concatenate %61, %82 in 1 : vector<8x64xf32>, vector<8x64xf32> -> vector<8x128xf32>
    %84 = arith.truncf %83 : vector<8x128xf32> to vector<8x128xbf16>
    %c0_27 = arith.constant 0 : index
    %c0_28 = arith.constant 0 : index
    %c0_29 = arith.constant 0 : index
    %85 = vector.load %arg6[%c0_27, %c0_28, %c0_29] : memref<1x128x128xbf16, #tpu.memory_space<vmem>>, vector<1x128x128xbf16>
    %86 = vector.shape_cast %85 : vector<1x128x128xbf16> to vector<128x128xbf16>
    %cst_30 = arith.constant dense<0.000000e+00> : vector<8x128xf32>
    %87 = tpu.matmul %84, %86, %cst_30 {dimension_numbers = #tpu.dot_dimension_numbers<[1], [0], [0], [1], [0, 0, 1, 1], [], []>} : vector<8x128xbf16>, vector<128x128xbf16>, vector<8x128xf32> -> vector<8x128xf32>
    %88 = vector.broadcast %9 : vector<1x128xf32> to vector<8x128xf32>
    %89 = arith.addf %87, %88 : vector<8x128xf32>
    %90 = arith.addf %4, %89 : vector<8x128xf32>
    %cst_31 = arith.constant dense<0.000000e+00> : vector<8xf32>
    %91 = vector.multi_reduction <add>, %90, %cst_31 [1] : vector<8x128xf32> to vector<8xf32>
    %92 = vector.shape_cast %91 : vector<8xf32> to vector<8x1xf32>
    %cst_32 = arith.constant 1.280000e+02 : f32
    %93 = vector.broadcast %cst_32 : f32 to vector<8x1xf32>
    %94 = arith.divf %92, %93 : vector<8x1xf32>
    %95 = vector.broadcast %94 : vector<8x1xf32> to vector<8x128xf32>
    %96 = arith.subf %90, %95 : vector<8x128xf32>
    %97 = arith.mulf %96, %96 : vector<8x128xf32>
    %cst_33 = arith.constant dense<0.000000e+00> : vector<8xf32>
    %98 = vector.multi_reduction <add>, %97, %cst_33 [1] : vector<8x128xf32> to vector<8xf32>
    %99 = vector.shape_cast %98 : vector<8xf32> to vector<8x1xf32>
    %cst_34 = arith.constant 1.280000e+02 : f32
    %100 = vector.broadcast %cst_34 : f32 to vector<8x1xf32>
    %101 = arith.divf %99, %100 : vector<8x1xf32>
    %102 = vector.broadcast %94 : vector<8x1xf32> to vector<8x128xf32>
    %103 = arith.subf %90, %102 : vector<8x128xf32>
    %cst_35 = arith.constant 9.99999974E-6 : f32
    %104 = vector.broadcast %cst_35 : f32 to vector<8x1xf32>
    %105 = arith.addf %101, %104 : vector<8x1xf32>
    %106 = math.rsqrt %105 : vector<8x1xf32>
    %107 = vector.broadcast %106 : vector<8x1xf32> to vector<8x128xf32>
    %108 = arith.mulf %103, %107 : vector<8x128xf32>
    %109 = vector.broadcast %10 : vector<1x128xf32> to vector<8x128xf32>
    %110 = arith.mulf %108, %109 : vector<8x128xf32>
    %111 = vector.broadcast %11 : vector<1x128xf32> to vector<8x128xf32>
    %112 = arith.addf %110, %111 : vector<8x128xf32>
    %113 = arith.truncf %112 : vector<8x128xf32> to vector<8x128xbf16>
    %c0_36 = arith.constant 0 : index
    %c0_37 = arith.constant 0 : index
    %c0_38 = arith.constant 0 : index
    %114 = vector.load %arg7[%c0_36, %c0_37, %c0_38] : memref<1x128x512xbf16, #tpu.memory_space<vmem>>, vector<1x128x512xbf16>
    %115 = vector.shape_cast %114 : vector<1x128x512xbf16> to vector<128x512xbf16>
    %cst_39 = arith.constant dense<0.000000e+00> : vector<8x512xf32>
    %116 = tpu.matmul %113, %115, %cst_39 {dimension_numbers = #tpu.dot_dimension_numbers<[1], [0], [0], [1], [0, 0, 1, 1], [], []>} : vector<8x128xbf16>, vector<128x512xbf16>, vector<8x512xf32> -> vector<8x512xf32>
    %117 = vector.broadcast %14 : vector<1x512xf32> to vector<8x512xf32>
    %118 = arith.addf %116, %117 : vector<8x512xf32>
    %cst_40 = arith.constant 5.000000e-01 : f32
    %119 = vector.broadcast %cst_40 : f32 to vector<8x512xf32>
    %120 = arith.mulf %119, %118 : vector<8x512xf32>
    %cst_41 = arith.constant 4.471500e-02 : f32
    %121 = vector.broadcast %cst_41 : f32 to vector<8x512xf32>
    %122 = arith.mulf %121, %118 : vector<8x512xf32>
    %123 = arith.mulf %122, %118 : vector<8x512xf32>
    %124 = arith.mulf %123, %118 : vector<8x512xf32>
    %125 = arith.addf %118, %124 : vector<8x512xf32>
    %cst_42 = arith.constant 0.797884583 : f32
    %126 = vector.broadcast %cst_42 : f32 to vector<8x512xf32>
    %127 = arith.mulf %126, %125 : vector<8x512xf32>
    %128 = math.tanh %127 : vector<8x512xf32>
    %cst_43 = arith.constant 1.000000e+00 : f32
    %129 = vector.broadcast %cst_43 : f32 to vector<8x512xf32>
    %130 = arith.addf %129, %128 : vector<8x512xf32>
    %131 = arith.mulf %120, %130 : vector<8x512xf32>
    %132 = arith.truncf %131 : vector<8x512xf32> to vector<8x512xbf16>
    %c0_44 = arith.constant 0 : index
    %c0_45 = arith.constant 0 : index
    %c0_46 = arith.constant 0 : index
    %133 = vector.load %arg8[%c0_44, %c0_45, %c0_46] : memref<1x512x128xbf16, #tpu.memory_space<vmem>>, vector<1x512x128xbf16>
    %134 = vector.shape_cast %133 : vector<1x512x128xbf16> to vector<512x128xbf16>
    %cst_47 = arith.constant dense<0.000000e+00> : vector<8x128xf32>
    %135 = tpu.matmul %132, %134, %cst_47 {dimension_numbers = #tpu.dot_dimension_numbers<[1], [0], [0], [1], [0, 0, 1, 1], [], []>} : vector<8x512xbf16>, vector<512x128xbf16>, vector<8x128xf32> -> vector<8x128xf32>
    %136 = vector.broadcast %12 : vector<1x128xf32> to vector<8x128xf32>
    %137 = arith.addf %135, %136 : vector<8x128xf32>
    %138 = arith.addf %90, %137 : vector<8x128xf32>
    %c0_48 = arith.constant 0 : index
    %c0_49 = arith.constant 0 : index
    %c0_50 = arith.constant 0 : index
    %139 = vector.load %arg10[%c0_48, %c0_49, %c0_50] : memref<1x8x128xf32, #tpu.memory_space<vmem>>, vector<1x8x128xf32>
    %140 = vector.shape_cast %139 : vector<1x8x128xf32> to vector<8x128xf32>
    %141 = vector.shape_cast %138 : vector<8x128xf32> to vector<1x8x128xf32>
    tpu.vector_store %arg10[%c0_48, %c0_49, %c0_50], %141 {strides = array<i32>} : memref<1x8x128xf32, #tpu.memory_space<vmem>>, vector<1x8x128xf32>,
    %c1_i32 = arith.constant 1 : i32
    %142 = arith.cmpi eq, %arg1, %c1_i32 : i32
    %143 = arith.extui %142 : i1 to i32
    %c0_i32_51 = arith.constant 0 : i32
    %144 = arith.cmpi ne, %143, %c0_i32_51 : i32
    scf.if %144 {
      %c0_52 = arith.constant 0 : index
      %c0_53 = arith.constant 0 : index
      %145 = vector.load %arg9[%c0_52, %c0_53] : memref<2x128xf32, #tpu.memory_space<vmem>>, vector<2x128xf32>
      %146 = vector.extract_strided_slice %145 {offsets = [0, 0], sizes = [1, 128], strides = [1, 1]} : vector<2x128xf32> to vector<1x128xf32>
      %147 = vector.extract_strided_slice %145 {offsets = [1, 0], sizes = [1, 128], strides = [1, 1]} : vector<2x128xf32> to vector<1x128xf32>
      %cst_54 = arith.constant dense<0.000000e+00> : vector<8xf32>
      %148 = vector.multi_reduction <add>, %138, %cst_54 [1] : vector<8x128xf32> to vector<8xf32>
      %149 = vector.shape_cast %148 : vector<8xf32> to vector<8x1xf32>
      %cst_55 = arith.constant 1.280000e+02 : f32
      %150 = vector.broadcast %cst_55 : f32 to vector<8x1xf32>
      %151 = arith.divf %149, %150 : vector<8x1xf32>
      %152 = vector.broadcast %151 : vector<8x1xf32> to vector<8x128xf32>
      %153 = arith.subf %138, %152 : vector<8x128xf32>
      %154 = arith.mulf %153, %153 : vector<8x128xf32>
      %cst_56 = arith.constant dense<0.000000e+00> : vector<8xf32>
      %155 = vector.multi_reduction <add>, %154, %cst_56 [1] : vector<8x128xf32> to vector<8xf32>
      %156 = vector.shape_cast %155 : vector<8xf32> to vector<8x1xf32>
      %cst_57 = arith.constant 1.280000e+02 : f32
      %157 = vector.broadcast %cst_57 : f32 to vector<8x1xf32>
      %158 = arith.divf %156, %157 : vector<8x1xf32>
      %159 = vector.broadcast %151 : vector<8x1xf32> to vector<8x128xf32>
      %160 = arith.subf %138, %159 : vector<8x128xf32>
      %cst_58 = arith.constant 9.99999974E-6 : f32
      %161 = vector.broadcast %cst_58 : f32 to vector<8x1xf32>
      %162 = arith.addf %158, %161 : vector<8x1xf32>
      %163 = math.rsqrt %162 : vector<8x1xf32>
      %164 = vector.broadcast %163 : vector<8x1xf32> to vector<8x128xf32>
      %165 = arith.mulf %160, %164 : vector<8x128xf32>
      %166 = vector.broadcast %146 : vector<1x128xf32> to vector<8x128xf32>
      %167 = arith.mulf %165, %166 : vector<8x128xf32>
      %168 = vector.broadcast %147 : vector<1x128xf32> to vector<8x128xf32>
      %169 = arith.addf %167, %168 : vector<8x128xf32>
      %c0_59 = arith.constant 0 : index
      %c0_60 = arith.constant 0 : index
      %c0_61 = arith.constant 0 : index
      %170 = vector.load %arg10[%c0_59, %c0_60, %c0_61] : memref<1x8x128xf32, #tpu.memory_space<vmem>>, vector<1x8x128xf32>
      %171 = vector.shape_cast %170 : vector<1x8x128xf32> to vector<8x128xf32>
      %172 = vector.shape_cast %169 : vector<8x128xf32> to vector<1x8x128xf32>
      tpu.vector_store %arg10[%c0_59, %c0_60, %c0_61], %172 {strides = array<i32>} : memref<1x8x128xf32, #tpu.memory_space<vmem>>, vector<1x8x128xf32>,
    } else {
    }
    return
  }
  func.func @transform_0(%arg0: i32, %arg1: i32) -> (i32, i32, i32) {
    %c0_i32 = arith.constant 0 : i32
    %c0_i32_0 = arith.constant 0 : i32
    %c0_i32_1 = arith.constant 0 : i32
    return %arg0, %c0_i32, %c0_i32_0 : i32, i32, i32
  }
  func.func @transform_1(%arg0: i32, %arg1: i32) -> (i32, i32, i32) {
    %c0_i32 = arith.constant 0 : i32
    %c0_i32_0 = arith.constant 0 : i32
    %c0_i32_1 = arith.constant 0 : i32
    return %arg1, %c0_i32, %c0_i32_0 : i32, i32, i32
  }
  func.func @transform_2(%arg0: i32, %arg1: i32) -> (i32, i32, i32) {
    %c0_i32 = arith.constant 0 : i32
    %c0_i32_0 = arith.constant 0 : i32
    %c0_i32_1 = arith.constant 0 : i32
    return %arg1, %c0_i32, %c0_i32_0 : i32, i32, i32
  }
  func.func @transform_3(%arg0: i32, %arg1: i32) -> (i32, i32, i32) {
    %c0_i32 = arith.constant 0 : i32
    %c0_i32_0 = arith.constant 0 : i32
    %c0_i32_1 = arith.constant 0 : i32
    return %arg1, %c0_i32, %c0_i32_0 : i32, i32, i32
  }
  func.func @transform_4(%arg0: i32, %arg1: i32) -> (i32, i32, i32) {
    %c0_i32 = arith.constant 0 : i32
    %c0_i32_0 = arith.constant 0 : i32
    %c0_i32_1 = arith.constant 0 : i32
    return %arg1, %c0_i32, %c0_i32_0 : i32, i32, i32
  }
  func.func @transform_5(%arg0: i32, %arg1: i32) -> (i32, i32, i32) {
    %c0_i32 = arith.constant 0 : i32
    %c0_i32_0 = arith.constant 0 : i32
    %c0_i32_1 = arith.constant 0 : i32
    return %arg1, %c0_i32, %c0_i32_0 : i32, i32, i32
  }
  func.func @transform_6(%arg0: i32, %arg1: i32) -> (i32, i32, i32) {
    %c0_i32 = arith.constant 0 : i32
    %c0_i32_0 = arith.constant 0 : i32
    %c0_i32_1 = arith.constant 0 : i32
    return %arg1, %c0_i32, %c0_i32_0 : i32, i32, i32
  }
  func.func @transform_7(%arg0: i32, %arg1: i32) -> (i32, i32) {
    %c0_i32 = arith.constant 0 : i32
    %c0_i32_0 = arith.constant 0 : i32
    %c0_i32_1 = arith.constant 0 : i32
    return %c0_i32, %c0_i32_0 : i32, i32
  }
  func.func @transform_8(%arg0: i32, %arg1: i32) -> (i32, i32, i32) {
    %c0_i32 = arith.constant 0 : i32
    %c0_i32_0 = arith.constant 0 : i32
    %c0_i32_1 = arith.constant 0 : i32
    return %arg0, %c0_i32, %c0_i32_0 : i32, i32, i32
  }
}

</mosaic_0001>

<llo_original>
// kernel: bert_embedder_forward.1
$region0: #{bert_embedder_forward.1}
  #allocation0 [shape = 'u32[]', space=smem, size = 0x4, offset = 0x4, fixed_abs, tag = 'smem constant byte address 0x4 - core index']
  #allocation1 [shape = 'u32[72,128]{1,0:T(1,128)}', space=vmem, size = 0x9000, scoped, tag = 'internal scratch']
  %s0 = inlined_call_operand.vmem [shape: f32[2,8,128], index: 0, kind: input, shape index: {}]
  %s1 = inlined_call_operand.vmem [shape: f32[2,6,128], index: 1, kind: input, shape index: {}]
  %s2 = inlined_call_operand.vmem [shape: f32[2,1,512], index: 2, kind: input, shape index: {}]
  %s3 = inlined_call_operand.hbm [shape: bf16[2,128,384], index: 3, kind: input, shape index: {}]
  %s4 = inlined_call_operand.vmem [shape: bf16[2,128,128], index: 4, kind: input, shape index: {}]
  %s5 = inlined_call_operand.hbm [shape: bf16[2,128,512], index: 5, kind: input, shape index: {}]
  %s6 = inlined_call_operand.hbm [shape: bf16[2,512,128], index: 6, kind: input, shape index: {}]
  %s7 = inlined_call_operand.vmem [shape: f32[2,128], index: 7, kind: input, shape index: {}]
  %s8 = inlined_call_operand.hbm [shape: f32[2,8,128], index: 8, kind: output, shape index: {}]
  %s9 = sld [smem:[#allocation0]]
  $region85: #{bert_embedder_forward.1} parent=0
    _
  %s11 = ssub.s32 1, %s9
  %s12 = scalar_select 0, %s11, %s9
  $region1: #{bert_embedder_forward.1} parent=0
    #allocation2 [shape = 'u8[196608]{0}', space=vmem, size = 0x30000, scoped, tag = 'input window, operand 3']
    #allocation3 [shape = 's32[2]{0}', space=sflag, size = 0x8, scoped, tag = 'scoped memory for bert_embedder_forward.1']
    #allocation4 [shape = 's32[2]{0}', space=sflag, size = 0x8, scoped, tag = 'scoped memory for bert_embedder_forward.1']
    #allocation5 [shape = 'u8[262144]{0}', space=vmem, size = 0x40000, scoped, tag = 'input window, operand 5']
    #allocation6 [shape = 's32[2]{0}', space=sflag, size = 0x8, scoped, tag = 'scoped memory for bert_embedder_forward.1']
    #allocation7 [shape = 'u8[262144]{0}', space=vmem, size = 0x40000, scoped, tag = 'input window, operand 6']
    #allocation8 [shape = 'u8[8192]{0}', space=vmem, size = 0x2000, scoped, tag = 'output window, operand 0']
    %13 = vsyncpa [#allocation3], 0
    %s14 = scalar_lea.sflag [#allocation3], 1
    %15 = vsyncpa %s14, 0
    %16 = vsyncpa [#allocation6], 0
    %s17 = scalar_lea.sflag [#allocation6], 1
    %18 = vsyncpa %s17, 0
    %19 = vsyncpa [#allocation4], 0
    %s20 = scalar_lea.sflag [#allocation4], 1
    %21 = vsyncpa %s20, 0
    loop: start=0, step=1, limit=6
    $region2: #{bert_embedder_forward.1} parent=1 // loop_pre_header
      _
    $region3: #{bert_embedder_forward.1} parent=1 // loop_header
      %s23 = sphi 0, %s27
      %p24 = scmp.ge.s32.totalorder %s23, 6
      %s30 = sphi 0, %s42
      %s31 = sphi 0, %s38
      %s32 = sphi 0, %s30
      %s33 = sphi 0, %s31
      %s34 = sphi 0, %s32
      %s35 = sphi 0, %s33
      %s45 = sphi 0, %s47
      %s48 = sphi 0, %s45
      %s49 = sphi 0, %s48
      %s65 = sphi 0, %s49
      %s71 = sphi 0, %s73
      %s74 = sphi 0, %s71
      %s75 = sphi 0, %s74
      %s91 = sphi 0, %s75
      %s97 = sphi 0, %s99
      %s100 = sphi 0, %s97
      %s101 = sphi 0, %s100
      %s117 = sphi 0, %s101
      %s123 = sphi 0, %s125
      %s126 = sphi 0, %s123
      %s127 = sphi 0, %s126
      %s143 = sphi 0, %s127
      %s149 = sphi 0, %s151
      %s152 = sphi 0, %s149
      %s153 = sphi 0, %s152
      %s169 = sphi 0, %s153
      %s175 = sphi 0, %s177
      %s178 = sphi 0, %s175
      %s179 = sphi 0, %s178
      %s195 = sphi 0, %s179
      %s201 = sphi 0, %s203
      %s204 = sphi 0, %s201
      %s205 = sphi 0, %s204
      %s221 = sphi 0, %s205
      %s225 = sphi 0, %s225
      %s227 = sphi 0, %s225
      %s228 = sphi 0, %s227
      %s242 = sphi 0, %s228
      %s248 = sphi 0, %s250
      %s251 = sphi 0, %s248
      %s252 = sphi 0, %s251
      %s268 = sphi 0, %s252
    $region4: #{bert_embedder_forward.1} parent=1 // loop_header_branch
      %26 = sbr.rel (%p24) target = $region8
    $region5: #{bert_embedder_forward.1} parent=1 // loop_body
      %s28 = ssub.s32 %s23, 1
      %s29 = ssub.s32 %s23, 2
      %s36 = sadd.s32 1, %s31
      %p37 = scmp.ge.s32.totalorder %s36, 2
      %s38 = scalar_select %p37, 0, %s36
      %s39 = sadd.s32 1, %s30
      %s40 = scalar_select %p37, %s39, %s30
      %p41 = scmp.ge.s32.totalorder %s40, 2
      %s42 = scalar_select %p41, 0, %s40
      %s43 = ssub.s32 %s30, %s42
      %p44 = scmp.eq.s32.totalorder %s43, 0
      %s46 = sadd.s32 %s45, 1
      %s47 = scalar_select %p44, %s45, %s46
      %p50 = pneg %p44
      %p51 = scmp.eq.s32.totalorder %s23, 3
      %p52 = por %p50, %p51
      %p53 = scmp.ne.s32.totalorder %s45, %s48
      %p54 = scmp.eq.s32.totalorder %s23, 0
      %p55 = por %p53, %p54
      %p56 = scmp.ne.s32.totalorder %s45, %s48
      %p57 = scmp.eq.s32.totalorder %s28, 3
      %p58 = por %p56, %p57
      %p59 = scmp.ne.s32.totalorder %s48, %s49
      %p60 = scmp.eq.s32.totalorder %s28, 0
      %p61 = por %p59, %p60
      %p62 = scmp.ne.s32.totalorder %s48, %s49
      %p63 = scmp.eq.s32.totalorder %s29, 3
      %p64 = por %p62, %p63
      %p66 = scmp.ne.s32.totalorder %s49, %s65
      %p67 = scmp.eq.s32.totalorder %s29, 0
      %p68 = por %p66, %p67
      %s69 = ssub.s32 %s31, %s38
      %p70 = scmp.eq.s32.totalorder %s69, 0
      %s72 = sadd.s32 %s71, 1
      %s73 = scalar_select %p70, %s71, %s72
      %p76 = pneg %p70
      %p77 = scmp.eq.s32.totalorder %s23, 3
      %p78 = por %p76, %p77
      %p79 = scmp.ne.s32.totalorder %s71, %s74
      %p80 = scmp.eq.s32.totalorder %s23, 0
      %p81 = por %p79, %p80
      %p82 = scmp.ne.s32.totalorder %s71, %s74
      %p83 = scmp.eq.s32.totalorder %s28, 3
      %p84 = por %p82, %p83
      %p85 = scmp.ne.s32.totalorder %s74, %s75
      %p86 = scmp.eq.s32.totalorder %s28, 0
      %p87 = por %p85, %p86
      %p88 = scmp.ne.s32.totalorder %s74, %s75
      %p89 = scmp.eq.s32.totalorder %s29, 3
      %p90 = por %p88, %p89
      %p92 = scmp.ne.s32.totalorder %s75, %s91
      %p93 = scmp.eq.s32.totalorder %s29, 0
      %p94 = por %p92, %p93
      %s95 = ssub.s32 %s31, %s38
      %p96 = scmp.eq.s32.totalorder %s95, 0
      %s98 = sadd.s32 %s97, 1
      %s99 = scalar_select %p96, %s97, %s98
      %p102 = pneg %p96
      %p103 = scmp.eq.s32.totalorder %s23, 3
      %p104 = por %p102, %p103
      %p105 = scmp.ne.s32.totalorder %s97, %s100
      %p106 = scmp.eq.s32.totalorder %s23, 0
      %p107 = por %p105, %p106
      %p108 = scmp.ne.s32.totalorder %s97, %s100
      %p109 = scmp.eq.s32.totalorder %s28, 3
      %p110 = por %p108, %p109
      %p111 = scmp.ne.s32.totalorder %s100, %s101
      %p112 = scmp.eq.s32.totalorder %s28, 0
      %p113 = por %p111, %p112
      %p114 = scmp.ne.s32.totalorder %s100, %s101
      %p115 = scmp.eq.s32.totalorder %s29, 3
      %p116 = por %p114, %p115
      %p118 = scmp.ne.s32.totalorder %s101, %s117
      %p119 = scmp.eq.s32.totalorder %s29, 0
      %p120 = por %p118, %p119
      %s121 = ssub.s32 %s31, %s38
      %p122 = scmp.eq.s32.totalorder %s121, 0
      %s124 = sadd.s32 %s123, 1
      %s125 = scalar_select %p122, %s123, %s124
      %p128 = pneg %p122
      %p129 = scmp.eq.s32.totalorder %s23, 3
      %p130 = por %p128, %p129
      %p131 = scmp.ne.s32.totalorder %s123, %s126
      %p132 = scmp.eq.s32.totalorder %s23, 0
      %p133 = por %p131, %p132
      %p134 = scmp.ne.s32.totalorder %s123, %s126
      %p135 = scmp.eq.s32.totalorder %s28, 3
      %p136 = por %p134, %p135
      %p137 = scmp.ne.s32.totalorder %s126, %s127
      %p138 = scmp.eq.s32.totalorder %s28, 0
      %p139 = por %p137, %p138
      %p140 = scmp.ne.s32.totalorder %s126, %s127
      %p141 = scmp.eq.s32.totalorder %s29, 3
      %p142 = por %p140, %p141
      %p144 = scmp.ne.s32.totalorder %s127, %s143
      %p145 = scmp.eq.s32.totalorder %s29, 0
      %p146 = por %p144, %p145
      %s147 = ssub.s32 %s31, %s38
      %p148 = scmp.eq.s32.totalorder %s147, 0
      %s150 = sadd.s32 %s149, 1
      %s151 = scalar_select %p148, %s149, %s150
      %p154 = pneg %p148
      %p155 = scmp.eq.s32.totalorder %s23, 3
      %p156 = por %p154, %p155
      %p157 = scmp.ne.s32.totalorder %s149, %s152
      %p158 = scmp.eq.s32.totalorder %s23, 0
      %p159 = por %p157, %p158
      %p160 = scmp.ne.s32.totalorder %s149, %s152
      %p161 = scmp.eq.s32.totalorder %s28, 3
      %p162 = por %p160, %p161
      %p163 = scmp.ne.s32.totalorder %s152, %s153
      %p164 = scmp.eq.s32.totalorder %s28, 0
      %p165 = por %p163, %p164
      %p166 = scmp.ne.s32.totalorder %s152, %s153
      %p167 = scmp.eq.s32.totalorder %s29, 3
      %p168 = por %p166, %p167
      %p170 = scmp.ne.s32.totalorder %s153, %s169
      %p171 = scmp.eq.s32.totalorder %s29, 0
      %p172 = por %p170, %p171
      %s173 = ssub.s32 %s31, %s38
      %p174 = scmp.eq.s32.totalorder %s173, 0
      %s176 = sadd.s32 %s175, 1
      %s177 = scalar_select %p174, %s175, %s176
      %p180 = pneg %p174
      %p181 = scmp.eq.s32.totalorder %s23, 3
      %p182 = por %p180, %p181
      %p183 = scmp.ne.s32.totalorder %s175, %s178
      %p184 = scmp.eq.s32.totalorder %s23, 0
      %p185 = por %p183, %p184
      %p186 = scmp.ne.s32.totalorder %s175, %s178
      %p187 = scmp.eq.s32.totalorder %s28, 3
      %p188 = por %p186, %p187
      %p189 = scmp.ne.s32.totalorder %s178, %s179
      %p190 = scmp.eq.s32.totalorder %s28, 0
      %p191 = por %p189, %p190
      %p192 = scmp.ne.s32.totalorder %s178, %s179
      %p193 = scmp.eq.s32.totalorder %s29, 3
      %p194 = por %p192, %p193
      %p196 = scmp.ne.s32.totalorder %s179, %s195
      %p197 = scmp.eq.s32.totalorder %s29, 0
      %p198 = por %p196, %p197
      %s199 = ssub.s32 %s31, %s38
      %p200 = scmp.eq.s32.totalorder %s199, 0
      %s202 = sadd.s32 %s201, 1
      %s203 = scalar_select %p200, %s201, %s202
      %p206 = pneg %p200
      %p207 = scmp.eq.s32.totalorder %s23, 3
      %p208 = por %p206, %p207
      %p209 = scmp.ne.s32.totalorder %s201, %s204
      %p210 = scmp.eq.s32.totalorder %s23, 0
      %p211 = por %p209, %p210
      %p212 = scmp.ne.s32.totalorder %s201, %s204
      %p213 = scmp.eq.s32.totalorder %s28, 3
      %p214 = por %p212, %p213
      %p215 = scmp.ne.s32.totalorder %s204, %s205
      %p216 = scmp.eq.s32.totalorder %s28, 0
      %p217 = por %p215, %p216
      %p218 = scmp.ne.s32.totalorder %s204, %s205
      %p219 = scmp.eq.s32.totalorder %s29, 3
      %p220 = por %p218, %p219
      %p222 = scmp.ne.s32.totalorder %s205, %s221
      %p223 = scmp.eq.s32.totalorder %s29, 0
      %p224 = por %p222, %p223
      %s226 = sadd.s32 %s225, 1
      %p229 = scmp.eq.s32.totalorder %s23, 3
      %p230 = scmp.ne.s32.totalorder %s225, %s227
      %p231 = scmp.eq.s32.totalorder %s23, 0
      %p232 = por %p230, %p231
      %p233 = scmp.ne.s32.totalorder %s225, %s227
      %p234 = scmp.eq.s32.totalorder %s28, 3
      %p235 = por %p233, %p234
      %p236 = scmp.ne.s32.totalorder %s227, %s228
      %p237 = scmp.eq.s32.totalorder %s28, 0
      %p238 = por %p236, %p237
      %p239 = scmp.ne.s32.totalorder %s227, %s228
      %p240 = scmp.eq.s32.totalorder %s29, 3
      %p241 = por %p239, %p240
      %p243 = scmp.ne.s32.totalorder %s228, %s242
      %p244 = scmp.eq.s32.totalorder %s29, 0
      %p245 = por %p243, %p244
      %s246 = ssub.s32 %s30, %s42
      %p247 = scmp.eq.s32.totalorder %s246, 0
      %s249 = sadd.s32 %s248, 1
      %s250 = scalar_select %p247, %s248, %s249
      %p253 = pneg %p247
      %p254 = scmp.eq.s32.totalorder %s23, 3
      %p255 = por %p253, %p254
      %p256 = scmp.ne.s32.totalorder %s248, %s251
      %p257 = scmp.eq.s32.totalorder %s23, 0
      %p258 = por %p256, %p257
      %p259 = scmp.ne.s32.totalorder %s248, %s251
      %p260 = scmp.eq.s32.totalorder %s28, 3
      %p261 = por %p259, %p260
      %p262 = scmp.ne.s32.totalorder %s251, %s252
      %p263 = scmp.eq.s32.totalorder %s28, 0
      %p264 = por %p262, %p263
      %p265 = scmp.ne.s32.totalorder %s251, %s252
      %p266 = scmp.eq.s32.totalorder %s29, 3
      %p267 = por %p265, %p266
      %p269 = scmp.ne.s32.totalorder %s252, %s268
      %p270 = scmp.eq.s32.totalorder %s29, 0
      %p271 = por %p269, %p270
      %p272 = scmp.le.s32.totalorder 1, %s23
      %p273 = scmp.lt.s32.totalorder %s23, 5
      %p274 = pnand %p272, %p273
      %p275 = pneg %p274
      // Predicated region
      $region9: #{bert_embedder_forward.1} parent=5 // pred_check
        _
      $region10: #{bert_embedder_forward.1} parent=5 // pred_check_branch
        %277 = sbr.rel (%p274) target = $region12
      $region11: #{bert_embedder_forward.1} parent=5 // pred_region
        %s278 = ssub.s32 %s23, 1
        // Predicated region
        $region13: #{bert_embedder_forward.1} parent=11 // pred_check
          %p279 = pneg %p238
        $region14: #{bert_embedder_forward.1} parent=11 // pred_check_branch
          %281 = sbr.rel (%p279) target = $region16
        $region15: #{bert_embedder_forward.1} parent=11 // pred_region
          _
        $region16: #{bert_embedder_forward.1} parent=11 // pred_fallthru
          _
      $region12: #{bert_embedder_forward.1} parent=5 // pred_fallthru
        _
      %p282 = scmp.lt.s32.totalorder %s23, 4
      // Predicated region
      $region17: #{bert_embedder_forward.1} parent=5 // pred_check
        %p283 = pneg %p282
      $region18: #{bert_embedder_forward.1} parent=5 // pred_check_branch
        %285 = sbr.rel (%p283) target = $region20
      $region19: #{bert_embedder_forward.1} parent=5 // pred_region
        // Predicated region
        $region21: #{bert_embedder_forward.1} parent=19 // pred_check
          %p286 = pneg %p55
        $region22: #{bert_embedder_forward.1} parent=19 // pred_check_branch
          %288 = sbr.rel (%p286) target = $region24
        $region23: #{bert_embedder_forward.1} parent=19 // pred_region
          %p289 = scmp.lt.s32.totalorder %s30, 1
          %s290 = scalar_select %p289, %s30, 1
          %s291 = smul.addr %s290, 8
          %s292 = scalar_lea.vmem %s0, %s291
        $region24: #{bert_embedder_forward.1} parent=19 // pred_fallthru
          _
        // Predicated region
        $region25: #{bert_embedder_forward.1} parent=19 // pred_check
          %p293 = pneg %p81
        $region26: #{bert_embedder_forward.1} parent=19 // pred_check_branch
          %295 = sbr.rel (%p293) target = $region28
        $region27: #{bert_embedder_forward.1} parent=19 // pred_region
          %p296 = scmp.lt.s32.totalorder %s31, 1
          %s297 = scalar_select %p296, %s31, 1
          %s298 = smul.addr %s297, 8
          %s299 = scalar_lea.vmem %s1, %s298
        $region28: #{bert_embedder_forward.1} parent=19 // pred_fallthru
          _
        // Predicated region
        $region29: #{bert_embedder_forward.1} parent=19 // pred_check
          %p300 = pneg %p107
        $region30: #{bert_embedder_forward.1} parent=19 // pred_check_branch
          %302 = sbr.rel (%p300) target = $region32
        $region31: #{bert_embedder_forward.1} parent=19 // pred_region
          %p303 = scmp.lt.s32.totalorder %s31, 1
          %s304 = scalar_select %p303, %s31, 1
          %s305 = smul.addr %s304, 4
          %s306 = scalar_lea.vmem %s2, %s305
        $region32: #{bert_embedder_forward.1} parent=19 // pred_fallthru
          _
        // Predicated region
        $region33: #{bert_embedder_forward.1} parent=19 // pred_check
          %p307 = pneg %p133
        $region34: #{bert_embedder_forward.1} parent=19 // pred_check_branch
          %309 = sbr.rel (%p307) target = $region36
        $region35: #{bert_embedder_forward.1} parent=19 // pred_region
          %s310 = sand.u32 %s123, 1
          %s311 = scalar_lea.sflag [#allocation3], %s310
          %s312 = sand.u32 %s123, 1
          %s313 = smul.addr %s312, 192
          %s314 = scalar_lea.vmem [#allocation2], %s313
          %316 = vsyncadd %s311, 0
          %s317 = smul.addr %s31, 48
          %s318 = smul.addr %s317, 4
          %s319 = scalar_lea.hbm %s3, %s318
          %s320 = sshll.u32 %s319, 4
          %s321 = int_to_ptr.hbm [resolvable:$true] %s320
          %s322 = sshll.u32 %s314, 4
          %s323 = int_to_ptr.vmem [resolvable:$true] %s322
          %328 = dma.hbm_to_vmem [thread:$0]  %s321, 3072, %s323, %s311, 192, 192, 12
        $region36: #{bert_embedder_forward.1} parent=19 // pred_fallthru
          _
        // Predicated region
        $region37: #{bert_embedder_forward.1} parent=19 // pred_check
          %p329 = pneg %p159
        $region38: #{bert_embedder_forward.1} parent=19 // pred_check_branch
          %331 = sbr.rel (%p329) target = $region40
        $region39: #{bert_embedder_forward.1} parent=19 // pred_region
          %p332 = scmp.lt.s32.totalorder %s31, 1
          %s333 = scalar_select %p332, %s31, 1
          %s334 = smul.addr %s333, 16
          %s335 = smul.addr %s334, 4
          %s336 = scalar_lea.vmem %s4, %s335
        $region40: #{bert_embedder_forward.1} parent=19 // pred_fallthru
          _
        // Predicated region
        $region41: #{bert_embedder_forward.1} parent=19 // pred_check
          %p337 = pneg %p185
        $region42: #{bert_embedder_forward.1} parent=19 // pred_check_branch
          %339 = sbr.rel (%p337) target = $region44
        $region43: #{bert_embedder_forward.1} parent=19 // pred_region
          %s340 = sand.u32 %s23, 1
          %s341 = scalar_lea.sflag [#allocation6], %s340
          %s342 = sand.u32 %s175, 1
          %s343 = smul.addr %s342, 256
          %s344 = scalar_lea.vmem [#allocation5], %s343
          %346 = vsyncadd %s341, 0
          %s347 = smul.addr %s31, 64
          %s348 = smul.addr %s347, 4
          %s349 = scalar_lea.hbm %s5, %s348
          %s350 = sshll.u32 %s349, 4
          %s351 = int_to_ptr.hbm [resolvable:$true] %s350
          %s352 = sshll.u32 %s344, 4
          %s353 = int_to_ptr.vmem [resolvable:$true] %s352
          %358 = dma.hbm_to_vmem [thread:$0]  %s351, 4096, %s353, %s341, 256, 256, 16
        $region44: #{bert_embedder_forward.1} parent=19 // pred_fallthru
          _
        // Predicated region
        $region45: #{bert_embedder_forward.1} parent=19 // pred_check
          %p359 = pneg %p211
        $region46: #{bert_embedder_forward.1} parent=19 // pred_check_branch
          %361 = sbr.rel (%p359) target = $region48
        $region47: #{bert_embedder_forward.1} parent=19 // pred_region
          %s362 = sand.u32 %s23, 1
          %s363 = scalar_lea.sflag [#allocation6], %s362
          %s364 = sand.u32 %s201, 1
          %s365 = smul.addr %s364, 256
          %s366 = scalar_lea.vmem [#allocation7], %s365
          %368 = vsyncadd %s363, 0
          %s369 = smul.addr %s31, 64
          %s370 = smul.addr %s369, 4
          %s371 = scalar_lea.hbm %s6, %s370
          %s372 = sshll.u32 %s371, 4
          %s373 = int_to_ptr.hbm [resolvable:$true] %s372
          %s374 = sshll.u32 %s366, 4
          %s375 = int_to_ptr.vmem [resolvable:$true] %s374
          %380 = dma.hbm_to_vmem [thread:$0]  %s373, 4096, %s375, %s363, 64, 64, 4
        $region48: #{bert_embedder_forward.1} parent=19 // pred_fallthru
          _
      $region20: #{bert_embedder_forward.1} parent=5 // pred_fallthru
        _
      %p381 = scmp.le.s32.totalorder 1, %s23
      %p382 = scmp.lt.s32.totalorder %s23, 5
      %p383 = pnand %p381, %p382
      %p384 = pneg %p383
      // Predicated region
      $region49: #{bert_embedder_forward.1} parent=5 // pred_check
        _
      $region50: #{bert_embedder_forward.1} parent=5 // pred_check_branch
        %386 = sbr.rel (%p383) target = $region52
      $region51: #{bert_embedder_forward.1} parent=5 // pred_region
        %s387 = ssub.s32 %s23, 1
        %s388 = sand.u32 %s126, 1
        %s389 = scalar_lea.sflag [#allocation3], %s388
        %s390 = sand.u32 %s126, 1
        %s391 = smul.addr %s390, 192
        %s392 = scalar_lea.vmem [#allocation2], %s391
        // Predicated region
        $region53: #{bert_embedder_forward.1} parent=51 // pred_check
          %p393 = pneg %p139
        $region54: #{bert_embedder_forward.1} parent=51 // pred_check_branch
          %395 = sbr.rel (%p393) target = $region56
        $region55: #{bert_embedder_forward.1} parent=51 // pred_region
          %397 = dma.done %s389, 3072
        $region56: #{bert_embedder_forward.1} parent=51 // pred_fallthru
          _
        %s398 = sand.u32 %s28, 1
        %s399 = scalar_lea.sflag [#allocation6], %s398
        %s400 = sand.u32 %s178, 1
        %s401 = smul.addr %s400, 256
        %s402 = scalar_lea.vmem [#allocation5], %s401
        // Predicated region
        $region57: #{bert_embedder_forward.1} parent=51 // pred_check
          %p403 = pneg %p191
        $region58: #{bert_embedder_forward.1} parent=51 // pred_check_branch
          %405 = sbr.rel (%p403) target = $region60
        $region59: #{bert_embedder_forward.1} parent=51 // pred_region
          %407 = dma.done %s399, 4096
        $region60: #{bert_embedder_forward.1} parent=51 // pred_fallthru
          _
        %s408 = sand.u32 %s28, 1
        %s409 = scalar_lea.sflag [#allocation6], %s408
        %s410 = sand.u32 %s204, 1
        %s411 = smul.addr %s410, 256
        %s412 = scalar_lea.vmem [#allocation7], %s411
        // Predicated region
        $region61: #{bert_embedder_forward.1} parent=51 // pred_check
          %p413 = pneg %p217
        $region62: #{bert_embedder_forward.1} parent=51 // pred_check_branch
          %415 = sbr.rel (%p413) target = $region64
        $region63: #{bert_embedder_forward.1} parent=51 // pred_region
          %417 = dma.done %s409, 4096
        $region64: #{bert_embedder_forward.1} parent=51 // pred_fallthru
          _
        %p418 = scmp.lt.s32.totalorder %s32, 1
        %s419 = scalar_select %p418, %s32, 1
        %s420 = smul.addr %s419, 8
        %s421 = scalar_lea.vmem %s0, %s420
        %p422 = pneg %p61
        %p423 = pneg %p58
        %p424 = scmp.lt.s32.totalorder %s33, 1
        %s425 = scalar_select %p424, %s33, 1
        %s426 = smul.addr %s425, 8
        %s427 = scalar_lea.vmem %s1, %s426
        %p428 = pneg %p87
        %p429 = pneg %p84
        %p430 = scmp.lt.s32.totalorder %s33, 1
        %s431 = scalar_select %p430, %s33, 1
        %s432 = smul.addr %s431, 4
        %s433 = scalar_lea.vmem %s2, %s432
        %p434 = pneg %p113
        %p435 = pneg %p110
        %s436 = sand.u32 %s126, 1
        %s437 = scalar_lea.sflag [#allocation3], %s436
        %s438 = sand.u32 %s126, 1
        %s439 = smul.addr %s438, 192
        %s440 = scalar_lea.vmem [#allocation2], %s439
        %p441 = pneg %p139
        %p442 = pneg %p136
        %p443 = scmp.lt.s32.totalorder %s33, 1
        %s444 = scalar_select %p443, %s33, 1
        %s445 = smul.addr %s444, 16
        %s446 = smul.addr %s445, 4
        %s447 = scalar_lea.vmem %s4, %s446
        %p448 = pneg %p165
        %p449 = pneg %p162
        %s450 = sand.u32 %s28, 1
        %s451 = scalar_lea.sflag [#allocation6], %s450
        %s452 = sand.u32 %s178, 1
        %s453 = smul.addr %s452, 256
        %s454 = scalar_lea.vmem [#allocation5], %s453
        %p455 = pneg %p191
        %p456 = pneg %p188
        %s457 = sand.u32 %s28, 1
        %s458 = scalar_lea.sflag [#allocation6], %s457
        %s459 = sand.u32 %s204, 1
        %s460 = smul.addr %s459, 256
        %s461 = scalar_lea.vmem [#allocation7], %s460
        %p462 = pneg %p217
        %p463 = pneg %p214
        %p464 = pneg %p238
        %p465 = pneg %p235
        %p466 = pneg %p264
        %p467 = pneg %p261
        %s468 = sand.u32 %s251, 1
        %s469 = scalar_lea.sflag [#allocation4], %s468
        %s470 = sand.u32 %s251, 1
        %s471 = smul.addr %s470, 8
        %s472 = scalar_lea.vmem [#allocation8], %s471
        %p473 = scmp.lt.s32.totalorder %s32, 1
        %s474 = scalar_select %p473, %s32, 1
        %s475 = smul.addr %s474, 8
        %s476 = scalar_lea.vmem %s0, %s475
        %p477 = scmp.lt.s32.totalorder %s33, 1
        %s478 = scalar_select %p477, %s33, 1
        %s479 = smul.addr %s478, 8
        %s480 = scalar_lea.vmem %s1, %s479
        %p481 = scmp.lt.s32.totalorder %s33, 1
        %s482 = scalar_select %p481, %s33, 1
        %s483 = smul.addr %s482, 4
        %s484 = scalar_lea.vmem %s2, %s483
        %p485 = scmp.lt.s32.totalorder %s33, 1
        %s486 = scalar_select %p485, %s33, 1
        %s487 = smul.addr %s486, 16
        %s488 = smul.addr %s487, 4
        %s489 = scalar_lea.vmem %s4, %s488
        %p491 = scmp.eq.s32.totalorder %s33, 0
        // Predicated region
        $region65: #{bert_embedder_forward.1} parent=51 // pred_check
          %p492 = pneg %p491
        $region66: #{bert_embedder_forward.1} parent=51 // pred_check_branch
          %494 = sbr.rel (%p492) target = $region68
        $region67: #{bert_embedder_forward.1} parent=51 // pred_region
          %v495 = vld [vmem:[%s476] sm:$0xff]
          %496 = vst [vmem:[%s472] sm:$0xff] %v495
        $region68: #{bert_embedder_forward.1} parent=51 // pred_fallthru
          _
        %v497 = vld [vmem:[%s472] sm:$0xff]
        %v498 = vld [vmem:[%s480] sm:$0x3f]
        %v499 = vld [vmem:[%s484] sm:$0xf]
        %500 = vadd.xlane.f32.xlu0 %v497
        %v501 = vpop.xlane.xlu0 %500
        %v502 = vrcp.pop 128.0
        %v503 = vmul.f32 128.0, %v502
        %v504 = vsub.f32 1.0, %v503
        %v505 = vmul.f32 %v502, %v504
        %v506 = vadd.f32 %v502, %v505
        %vm507 = vweird.f32 %v502
        %v508 = vsel %vm507, %v502, %v506
        %v509 = vmul.f32 %v501, %v508
        %v510 = vsub.f32 %v497, %v509
        %v511 = vmul.f32 %v510, %v510
        %512 = vadd.xlane.f32.xlu0 %v511
        %v513 = vpop.xlane.xlu0 %512
        %v514 = vmul.f32 %v513, %v508
        %v515 = vadd.f32 %v514, 1e-05
        %v516 = vrsqrt.pop %v515
        %v517 = vmul.f32 %v516, %v515
        %v518 = vmul.f32 %v517, %v516
        %v519 = vmul.f32 0.5, %v518
        %v520 = vsub.f32 1.5, %v519
        %v521 = vmul.f32 %v516, %v520
        %vm522 = vweird.f32 %v515
        %vm523 = vweird.f32 %v516
        %vm524 = vmor %vm522, %vm523
        %v525 = vsel %vm524, %v516, %v521
        %v526 = vmul.f32 %v510, %v525
        %v527 = vperm.slane %v498, 0
        %v528 = vmul.f32 %v526, %v527
        %v529 = vperm.slane %v498, 1
        %v530 = vadd.f32 %v528, %v529
        %v531 = vpack.c.bf16 %v530, %v530
        %v532 = vld [vmem:[%s392] sm:$0xff]
        %v533 = vld [vmem:[%s392 + $0x8] sm:$0xf]
        %v534 = vld [vmem:[%s392 + $0xc] sm:$0xff]
        %v535 = vld [vmem:[%s392 + $0x14] sm:$0xf]
        %v536 = vld [vmem:[%s392 + $0x18] sm:$0xff]
        %v537 = vld [vmem:[%s392 + $0x20] sm:$0xf]
        %v538 = vld [vmem:[%s392 + $0x24] sm:$0xff]
        %v539 = vld [vmem:[%s392 + $0x2c] sm:$0xf]
        %v540 = vld [vmem:[%s392 + $0x30] sm:$0xff]
        %v541 = vld [vmem:[%s392 + $0x38] sm:$0xf]
        %v542 = vld [vmem:[%s392 + $0x3c] sm:$0xff]
        %v543 = vld [vmem:[%s392 + $0x44] sm:$0xf]
        %v544 = vld [vmem:[%s392 + $0x48] sm:$0xff]
        %v545 = vld [vmem:[%s392 + $0x50] sm:$0xf]
        %v546 = vld [vmem:[%s392 + $0x54] sm:$0xff]
        %v547 = vld [vmem:[%s392 + $0x5c] sm:$0xf]
        %v548 = vld [vmem:[%s392 + $0x60] sm:$0xff]
        %v549 = vld [vmem:[%s392 + $0x68] sm:$0xf]
        %v550 = vld [vmem:[%s392 + $0x6c] sm:$0xff]
        %v551 = vld [vmem:[%s392 + $0x74] sm:$0xf]
        %v552 = vld [vmem:[%s392 + $0x78] sm:$0xff]
        %v553 = vld [vmem:[%s392 + $0x80] sm:$0xf]
        %v554 = vld [vmem:[%s392 + $0x84] sm:$0xff]
        %v555 = vld [vmem:[%s392 + $0x8c] sm:$0xf]
        %v556 = vld [vmem:[%s392 + $0x90] sm:$0xff]
        %v557 = vld [vmem:[%s392 + $0x98] sm:$0xf]
        %v558 = vld [vmem:[%s392 + $0x9c] sm:$0xff]
        %v559 = vld [vmem:[%s392 + $0xa4] sm:$0xf]
        %v560 = vld [vmem:[%s392 + $0xa8] sm:$0xff]
        %v561 = vld [vmem:[%s392 + $0xb0] sm:$0xf]
        %v562 = vld [vmem:[%s392 + $0xb4] sm:$0xff]
        %v563 = vld [vmem:[%s392 + $0xbc] sm:$0xf]
        %v596 = vunpack.c.l.b16 %v532
        %v597 = vunpack.c.h.b16 %v532
        %v598 = vunpack.c.l.b16 %v533
        %v599 = vunpack.c.l.b16 %v534
        %v600 = vunpack.c.h.b16 %v534
        %v601 = vunpack.c.l.b16 %v535
        %v602 = vunpack.c.l.b16 %v536
        %v603 = vunpack.c.h.b16 %v536
        %v604 = vunpack.c.l.b16 %v537
        %v605 = vunpack.c.l.b16 %v538
        %v606 = vunpack.c.h.b16 %v538
        %v607 = vunpack.c.l.b16 %v539
        %v608 = vunpack.c.l.b16 %v540
        %v609 = vunpack.c.h.b16 %v540
        %v610 = vunpack.c.l.b16 %v541
        %v611 = vunpack.c.l.b16 %v542
        %v612 = vunpack.c.h.b16 %v542
        %v613 = vunpack.c.l.b16 %v543
        %v614 = vunpack.c.l.b16 %v544
        %v615 = vunpack.c.h.b16 %v544
        %v616 = vunpack.c.l.b16 %v545
        %v617 = vunpack.c.l.b16 %v546
        %v618 = vunpack.c.h.b16 %v546
        %v619 = vunpack.c.l.b16 %v547
        %v620 = vunpack.c.l.b16 %v548
        %v621 = vunpack.c.h.b16 %v548
        %v622 = vunpack.c.l.b16 %v549
        %v623 = vunpack.c.l.b16 %v550
        %v624 = vunpack.c.h.b16 %v550
        %v625 = vunpack.c.l.b16 %v551
        %v626 = vunpack.c.l.b16 %v552
        %v627 = vunpack.c.h.b16 %v552
        %v628 = vunpack.c.l.b16 %v553
        %v629 = vunpack.c.l.b16 %v554
        %v630 = vunpack.c.h.b16 %v554
        %v631 = vunpack.c.l.b16 %v555
        %v632 = vunpack.c.l.b16 %v556
        %v633 = vunpack.c.h.b16 %v556
        %v634 = vunpack.c.l.b16 %v557
        %v635 = vunpack.c.l.b16 %v558
        %v636 = vunpack.c.h.b16 %v558
        %v637 = vunpack.c.l.b16 %v559
        %v638 = vunpack.c.l.b16 %v560
        %v639 = vunpack.c.h.b16 %v560
        %v640 = vunpack.c.l.b16 %v561
        %v641 = vunpack.c.l.b16 %v562
        %v642 = vunpack.c.h.b16 %v562
        %v643 = vunpack.c.l.b16 %v563
        %v644 = vpack.c.b16 %v599, %v596
        %v645 = vpack.c.b16 %v600, %v597
        %v646 = vpack.c.b16 %v601, %v598
        %v647 = vpack.c.b16 %v605, %v602
        %v648 = vpack.c.b16 %v606, %v603
        %v649 = vpack.c.b16 %v607, %v604
        %v650 = vpack.c.b16 %v611, %v608
        %v651 = vpack.c.b16 %v612, %v609
        %v652 = vpack.c.b16 %v613, %v610
        %v653 = vpack.c.b16 %v617, %v614
        %v654 = vpack.c.b16 %v618, %v615
        %v655 = vpack.c.b16 %v619, %v616
        %v656 = vpack.c.b16 %v623, %v620
        %v657 = vpack.c.b16 %v624, %v621
        %v658 = vpack.c.b16 %v625, %v622
        %v659 = vpack.c.b16 %v629, %v626
        %v660 = vpack.c.b16 %v630, %v627
        %v661 = vpack.c.b16 %v631, %v628
        %v662 = vpack.c.b16 %v635, %v632
        %v663 = vpack.c.b16 %v636, %v633
        %v664 = vpack.c.b16 %v637, %v634
        %v665 = vpack.c.b16 %v641, %v638
        %v666 = vpack.c.b16 %v642, %v639
        %v667 = vpack.c.b16 %v643, %v640
        %692 = vmatpush.bf16.msra.mxu0 %v665
        %693 = vmatpush.bf16.msra.mxu0 %v662
        %694 = vmatpush.bf16.msra.mxu0 %v659
        %695 = vmatpush.bf16.msra.mxu0 %v656
        %696 = vmatpush.bf16.msra.mxu0 %v653
        %697 = vmatpush.bf16.msra.mxu0 %v650
        %698 = vmatpush.bf16.msra.mxu0 %v647
        %699 = vmatpush.bf16.msra.mxu0 %v644
        %700 = vmatmul.bf16.gmra.mxu0 %v531
        %v701 = vpop.f32.mrf.mxu0
        %v702 = vadd.f32 0.0, %v701
        %v703 = vpop.f32.mrf.mxu0
        %704 = vdwg.mxu0
        %705 = vmatpush.bf16.msra.mxu0 %v666
        %706 = vmatpush.bf16.msra.mxu0 %v663
        %707 = vmatpush.bf16.msra.mxu0 %v660
        %708 = vmatpush.bf16.msra.mxu0 %v657
        %709 = vmatpush.bf16.msra.mxu0 %v654
        %710 = vmatpush.bf16.msra.mxu0 %v651
        %711 = vmatpush.bf16.msra.mxu0 %v648
        %712 = vmatpush.bf16.msra.mxu0 %v645
        %713 = vmatmul.bf16.gmra.mxu0 %v531
        %v714 = vpop.f32.mrf.mxu0
        %v715 = vadd.f32 0.0, %v714
        %v716 = vpop.f32.mrf.mxu0
        %717 = vdwg.mxu0
        %718 = vmatpush.bf16.msra.mxu0 %v667
        %719 = vmatpush.bf16.msra.mxu0 %v664
        %720 = vmatpush.bf16.msra.mxu0 %v661
        %721 = vmatpush.bf16.msra.mxu0 %v658
        %722 = vmatpush.bf16.msra.mxu0 %v655
        %723 = vmatpush.bf16.msra.mxu0 %v652
        %724 = vmatpush.bf16.msra.mxu0 %v649
        %725 = vmatpush.bf16.msra.mxu0 %v646
        %726 = vmatmul.bf16.gmra.mxu0 %v531
        %v727 = vpop.f32.mrf.mxu0
        %v728 = vadd.f32 0.0, %v727
        %v729 = vpop.f32.mrf.mxu0
        %730 = vdwg.mxu0
        %v731 = vpack.c.bf16 %v702, %v702
        %v732 = vpack.c.bf16 %v715, %v715
        %v733 = vpack.c.bf16 %v728, %v728
        %vm734 = vcmask 523264
        %v736 = vsel %vm734, %v731, 0
        %v739 = vsel %vm734, %v732, 0
        %741 = vmatpush.bf16.xpose.msra.mxu0 0
        %742 = vmatpush.bf16.xpose.msra.mxu0 0
        %743 = vmatpush.bf16.xpose.msra.mxu0 0
        %744 = vmatpush.bf16.xpose.msra.mxu0 0
        %745 = vmatpush.bf16.xpose.msra.mxu0 0
        %746 = vmatpush.bf16.xpose.msra.mxu0 0
        %747 = vmatpush.bf16.xpose.msra.mxu0 0
        %748 = vmatpush.bf16.xpose.msra.mxu0 %v739
        %749 = vmatmul.bf16.gmra.mxu0 %v736
        %v750 = vpop.f32.mrf.mxu0
        %v751 = vadd.f32 0.0, %v750
        %v752 = vpop.f32.mrf.mxu0
        %753 = vdwg.mxu0
        %v754 = vmul.f32 %v751, 0.125
        %vm755 = vcmask 64512
        %v756 = vsel %vm755, %v754, -inf
        %757 = vmax.xlane.f32.xlu0 %v756
        %v758 = vpop.xlane.xlu0 %757
        %v759 = vsub.f32 %v754, %v758
        %v760 = vmul.f32 %v759, 1.442695
        %v761 = vpow.pop %v760
        %v762 = vsel %vm755, %v761, 0.0
        %763 = vadd.xlane.f32.xlu0 %v762
        %v764 = vpop.xlane.xlu0 %763
        %v765 = vrcp.pop %v764
        %v766 = vmul.f32 %v761, %v765
        %v767 = vpack.c.bf16 %v766, %v766
        %v769 = vsel %vm755, %v767, 0
        %vm771 = vcmask 1043456
        %v773 = vsel %vm771, %v733, 0
        %775 = vmatpush.bf16.msra.mxu0 0
        %776 = vmatpush.bf16.msra.mxu0 0
        %777 = vmatpush.bf16.msra.mxu0 0
        %778 = vmatpush.bf16.msra.mxu0 0
        %779 = vmatpush.bf16.msra.mxu0 0
        %780 = vmatpush.bf16.msra.mxu0 0
        %781 = vmatpush.bf16.msra.mxu0 0
        %782 = vmatpush.bf16.msra.mxu0 %v773
        %783 = vmatmul.bf16.gmra.mxu0 %v769
        %v784 = vpop.f32.mrf.mxu0
        %v785 = vadd.f32 0.0, %v784
        %v786 = vpop.f32.mrf.mxu0
        %787 = vdwg.mxu0
        %789 = vrot.lane.b32.xlu0 %v731, 64
        %v790 = vpop.permute.xlu0 %789
        %792 = vrot.lane.b32.xlu0 %v732, 64
        %v793 = vpop.permute.xlu0 %792
        %v795 = vsel %vm734, %v790, 0
        %v798 = vsel %vm734, %v793, 0
        %800 = vmatpush.bf16.xpose.msra.mxu0 0
        %801 = vmatpush.bf16.xpose.msra.mxu0 0
        %802 = vmatpush.bf16.xpose.msra.mxu0 0
        %803 = vmatpush.bf16.xpose.msra.mxu0 0
        %804 = vmatpush.bf16.xpose.msra.mxu0 0
        %805 = vmatpush.bf16.xpose.msra.mxu0 0
        %806 = vmatpush.bf16.xpose.msra.mxu0 0
        %807 = vmatpush.bf16.xpose.msra.mxu0 %v798
        %808 = vmatmul.bf16.gmra.mxu0 %v795
        %v809 = vpop.f32.mrf.mxu0
        %v810 = vadd.f32 0.0, %v809
        %v811 = vpop.f32.mrf.mxu0
        %812 = vdwg.mxu0
        %v813 = vmul.f32 %v810, 0.125
        %v814 = vsel %vm755, %v813, -inf
        %815 = vmax.xlane.f32.xlu0 %v814
        %v816 = vpop.xlane.xlu0 %815
        %v817 = vsub.f32 %v813, %v816
        %v818 = vmul.f32 %v817, 1.442695
        %v819 = vpow.pop %v818
        %v820 = vsel %vm755, %v819, 0.0
        %821 = vadd.xlane.f32.xlu0 %v820
        %v822 = vpop.xlane.xlu0 %821
        %v823 = vrcp.pop %v822
        %v824 = vmul.f32 %v819, %v823
        %v825 = vpack.c.bf16 %v824, %v824
        %827 = vrot.lane.b32.xlu0 %v733, 64
        %v828 = vpop.permute.xlu0 %827
        %v830 = vsel %vm755, %v825, 0
        %v833 = vsel %vm771, %v828, 0
        %835 = vmatpush.bf16.msra.mxu0 0
        %836 = vmatpush.bf16.msra.mxu0 0
        %837 = vmatpush.bf16.msra.mxu0 0
        %838 = vmatpush.bf16.msra.mxu0 0
        %839 = vmatpush.bf16.msra.mxu0 0
        %840 = vmatpush.bf16.msra.mxu0 0
        %841 = vmatpush.bf16.msra.mxu0 0
        %842 = vmatpush.bf16.msra.mxu0 %v833
        %843 = vmatmul.bf16.gmra.mxu0 %v830
        %v844 = vpop.f32.mrf.mxu0
        %v845 = vadd.f32 0.0, %v844
        %v846 = vpop.f32.mrf.mxu0
        %847 = vdwg.mxu0
        %849 = vrot.lane.b32.xlu0 %v845, 64
        %v850 = vpop.permute.xlu0 %849
        %v852 = vsel %vm734, %v785, %v850
        %v853 = vpack.c.bf16 %v852, %v852
        %v854 = vld [vmem:[%s489] sm:$0xf]
        %v855 = vld [vmem:[%s489 + $0x4] sm:$0xf]
        %v856 = vld [vmem:[%s489 + $0x8] sm:$0xf]
        %v857 = vld [vmem:[%s489 + $0xc] sm:$0xf]
        %v858 = vld [vmem:[%s489 + $0x10] sm:$0xf]
        %v859 = vld [vmem:[%s489 + $0x14] sm:$0xf]
        %v860 = vld [vmem:[%s489 + $0x18] sm:$0xf]
        %v861 = vld [vmem:[%s489 + $0x1c] sm:$0xf]
        %v862 = vld [vmem:[%s489 + $0x20] sm:$0xf]
        %v863 = vld [vmem:[%s489 + $0x24] sm:$0xf]
        %v864 = vld [vmem:[%s489 + $0x28] sm:$0xf]
        %v865 = vld [vmem:[%s489 + $0x2c] sm:$0xf]
        %v866 = vld [vmem:[%s489 + $0x30] sm:$0xf]
        %v867 = vld [vmem:[%s489 + $0x34] sm:$0xf]
        %v868 = vld [vmem:[%s489 + $0x38] sm:$0xf]
        %v869 = vld [vmem:[%s489 + $0x3c] sm:$0xf]
        %v870 = vperm.slane %v498, 2
        %v887 = vunpack.c.l.b16 %v854
        %v888 = vunpack.c.l.b16 %v855
        %v889 = vunpack.c.l.b16 %v856
        %v890 = vunpack.c.l.b16 %v857
        %v891 = vunpack.c.l.b16 %v858
        %v892 = vunpack.c.l.b16 %v859
        %v893 = vunpack.c.l.b16 %v860
        %v894 = vunpack.c.l.b16 %v861
        %v895 = vunpack.c.l.b16 %v862
        %v896 = vunpack.c.l.b16 %v863
        %v897 = vunpack.c.l.b16 %v864
        %v898 = vunpack.c.l.b16 %v865
        %v899 = vunpack.c.l.b16 %v866
        %v900 = vunpack.c.l.b16 %v867
        %v901 = vunpack.c.l.b16 %v868
        %v902 = vunpack.c.l.b16 %v869
        %v903 = vpack.c.b16 %v888, %v887
        %v904 = vpack.c.b16 %v890, %v889
        %v905 = vpack.c.b16 %v892, %v891
        %v906 = vpack.c.b16 %v894, %v893
        %v907 = vpack.c.b16 %v896, %v895
        %v908 = vpack.c.b16 %v898, %v897
        %v909 = vpack.c.b16 %v900, %v899
        %v910 = vpack.c.b16 %v902, %v901
        %919 = vmatpush.bf16.msra.mxu0 %v910
        %920 = vmatpush.bf16.msra.mxu0 %v909
        %921 = vmatpush.bf16.msra.mxu0 %v908
        %922 = vmatpush.bf16.msra.mxu0 %v907
        %923 = vmatpush.bf16.msra.mxu0 %v906
        %924 = vmatpush.bf16.msra.mxu0 %v905
        %925 = vmatpush.bf16.msra.mxu0 %v904
        %926 = vmatpush.bf16.msra.mxu0 %v903
        %927 = vmatmul.bf16.gmra.mxu0 %v853
        %v928 = vpop.f32.mrf.mxu0
        %v929 = vadd.f32 %v870, %v928
        %v930 = vpop.f32.mrf.mxu0
        %931 = vdwg.mxu0
        %v932 = vadd.f32 %v497, %v929
        %933 = vadd.xlane.f32.xlu0 %v932
        %v934 = vpop.xlane.xlu0 %933
        %v935 = vmul.f32 %v934, %v508
        %v936 = vsub.f32 %v932, %v935
        %v937 = vmul.f32 %v936, %v936
        %938 = vadd.xlane.f32.xlu0 %v937
        %v939 = vpop.xlane.xlu0 %938
        %v940 = vmul.f32 %v939, %v508
        %v941 = vadd.f32 %v940, 1e-05
        %v942 = vrsqrt.pop %v941
        %v943 = vmul.f32 %v942, %v941
        %v944 = vmul.f32 %v943, %v942
        %v945 = vmul.f32 0.5, %v944
        %v946 = vsub.f32 1.5, %v945
        %v947 = vmul.f32 %v942, %v946
        %vm948 = vweird.f32 %v941
        %vm949 = vweird.f32 %v942
        %vm950 = vmor %vm948, %vm949
        %v951 = vsel %vm950, %v942, %v947
        %v952 = vmul.f32 %v936, %v951
        %v953 = vperm.slane %v498, 3
        %v954 = vmul.f32 %v952, %v953
        %v955 = vperm.slane %v498, 4
        %v956 = vadd.f32 %v954, %v955
        %v957 = vpack.c.bf16 %v956, %v956
        %v958 = vld [vmem:[%s402] sm:$0xff]
        %v959 = vld [vmem:[%s402 + $0x8] sm:$0xff]
        %v960 = vld [vmem:[%s402 + $0x10] sm:$0xff]
        %v961 = vld [vmem:[%s402 + $0x18] sm:$0xff]
        %v962 = vld [vmem:[%s402 + $0x20] sm:$0xff]
        %v963 = vld [vmem:[%s402 + $0x28] sm:$0xff]
        %v964 = vld [vmem:[%s402 + $0x30] sm:$0xff]
        %v965 = vld [vmem:[%s402 + $0x38] sm:$0xff]
        %v966 = vld [vmem:[%s402 + $0x40] sm:$0xff]
        %v967 = vld [vmem:[%s402 + $0x48] sm:$0xff]
        %v968 = vld [vmem:[%s402 + $0x50] sm:$0xff]
        %v969 = vld [vmem:[%s402 + $0x58] sm:$0xff]
        %v970 = vld [vmem:[%s402 + $0x60] sm:$0xff]
        %v971 = vld [vmem:[%s402 + $0x68] sm:$0xff]
        %v972 = vld [vmem:[%s402 + $0x70] sm:$0xff]
        %v973 = vld [vmem:[%s402 + $0x78] sm:$0xff]
        %v974 = vld [vmem:[%s402 + $0x80] sm:$0xff]
        %v975 = vld [vmem:[%s402 + $0x88] sm:$0xff]
        %v976 = vld [vmem:[%s402 + $0x90] sm:$0xff]
        %v977 = vld [vmem:[%s402 + $0x98] sm:$0xff]
        %v978 = vld [vmem:[%s402 + $0xa0] sm:$0xff]
        %v979 = vld [vmem:[%s402 + $0xa8] sm:$0xff]
        %v980 = vld [vmem:[%s402 + $0xb0] sm:$0xff]
        %v981 = vld [vmem:[%s402 + $0xb8] sm:$0xff]
        %v982 = vld [vmem:[%s402 + $0xc0] sm:$0xff]
        %v983 = vld [vmem:[%s402 + $0xc8] sm:$0xff]
        %v984 = vld [vmem:[%s402 + $0xd0] sm:$0xff]
        %v985 = vld [vmem:[%s402 + $0xd8] sm:$0xff]
        %v986 = vld [vmem:[%s402 + $0xe0] sm:$0xff]
        %v987 = vld [vmem:[%s402 + $0xe8] sm:$0xff]
        %v988 = vld [vmem:[%s402 + $0xf0] sm:$0xff]
        %v989 = vld [vmem:[%s402 + $0xf8] sm:$0xff]
        %v991 = vperm.slane %v499, 0
        %v992 = vperm.slane %v499, 1
        %v993 = vperm.slane %v499, 2
        %v994 = vperm.slane %v499, 3
        %v1031 = vunpack.c.l.b16 %v958
        %v1032 = vunpack.c.h.b16 %v958
        %v1033 = vunpack.c.l.b16 %v959
        %v1034 = vunpack.c.h.b16 %v959
        %v1035 = vunpack.c.l.b16 %v960
        %v1036 = vunpack.c.h.b16 %v960
        %v1037 = vunpack.c.l.b16 %v961
        %v1038 = vunpack.c.h.b16 %v961
        %v1039 = vunpack.c.l.b16 %v962
        %v1040 = vunpack.c.h.b16 %v962
        %v1041 = vunpack.c.l.b16 %v963
        %v1042 = vunpack.c.h.b16 %v963
        %v1043 = vunpack.c.l.b16 %v964
        %v1044 = vunpack.c.h.b16 %v964
        %v1045 = vunpack.c.l.b16 %v965
        %v1046 = vunpack.c.h.b16 %v965
        %v1047 = vunpack.c.l.b16 %v966
        %v1048 = vunpack.c.h.b16 %v966
        %v1049 = vunpack.c.l.b16 %v967
        %v1050 = vunpack.c.h.b16 %v967
        %v1051 = vunpack.c.l.b16 %v968
        %v1052 = vunpack.c.h.b16 %v968
        %v1053 = vunpack.c.l.b16 %v969
        %v1054 = vunpack.c.h.b16 %v969
        %v1055 = vunpack.c.l.b16 %v970
        %v1056 = vunpack.c.h.b16 %v970
        %v1057 = vunpack.c.l.b16 %v971
        %v1058 = vunpack.c.h.b16 %v971
        %v1059 = vunpack.c.l.b16 %v972
        %v1060 = vunpack.c.h.b16 %v972
        %v1061 = vunpack.c.l.b16 %v973
        %v1062 = vunpack.c.h.b16 %v973
        %v1063 = vunpack.c.l.b16 %v974
        %v1064 = vunpack.c.h.b16 %v974
        %v1065 = vunpack.c.l.b16 %v975
        %v1066 = vunpack.c.h.b16 %v975
        %v1067 = vunpack.c.l.b16 %v976
        %v1068 = vunpack.c.h.b16 %v976
        %v1069 = vunpack.c.l.b16 %v977
        %v1070 = vunpack.c.h.b16 %v977
        %v1071 = vunpack.c.l.b16 %v978
        %v1072 = vunpack.c.h.b16 %v978
        %v1073 = vunpack.c.l.b16 %v979
        %v1074 = vunpack.c.h.b16 %v979
        %v1075 = vunpack.c.l.b16 %v980
        %v1076 = vunpack.c.h.b16 %v980
        %v1077 = vunpack.c.l.b16 %v981
        %v1078 = vunpack.c.h.b16 %v981
        %v1079 = vunpack.c.l.b16 %v982
        %v1080 = vunpack.c.h.b16 %v982
        %v1081 = vunpack.c.l.b16 %v983
        %v1082 = vunpack.c.h.b16 %v983
        %v1083 = vunpack.c.l.b16 %v984
        %v1084 = vunpack.c.h.b16 %v984
        %v1085 = vunpack.c.l.b16 %v985
        %v1086 = vunpack.c.h.b16 %v985
        %v1087 = vunpack.c.l.b16 %v986
        %v1088 = vunpack.c.h.b16 %v986
        %v1089 = vunpack.c.l.b16 %v987
        %v1090 = vunpack.c.h.b16 %v987
        %v1091 = vunpack.c.l.b16 %v988
        %v1092 = vunpack.c.h.b16 %v988
        %v1093 = vunpack.c.l.b16 %v989
        %v1094 = vunpack.c.h.b16 %v989
        %v1095 = vpack.c.b16 %v1035, %v1031
        %v1096 = vpack.c.b16 %v1036, %v1032
        %v1097 = vpack.c.b16 %v1037, %v1033
        %v1098 = vpack.c.b16 %v1038, %v1034
        %v1099 = vpack.c.b16 %v1043, %v1039
        %v1100 = vpack.c.b16 %v1044, %v1040
        %v1101 = vpack.c.b16 %v1045, %v1041
        %v1102 = vpack.c.b16 %v1046, %v1042
        %v1103 = vpack.c.b16 %v1051, %v1047
        %v1104 = vpack.c.b16 %v1052, %v1048
        %v1105 = vpack.c.b16 %v1053, %v1049
        %v1106 = vpack.c.b16 %v1054, %v1050
        %v1107 = vpack.c.b16 %v1059, %v1055
        %v1108 = vpack.c.b16 %v1060, %v1056
        %v1109 = vpack.c.b16 %v1061, %v1057
        %v1110 = vpack.c.b16 %v1062, %v1058
        %v1111 = vpack.c.b16 %v1067, %v1063
        %v1112 = vpack.c.b16 %v1068, %v1064
        %v1113 = vpack.c.b16 %v1069, %v1065
        %v1114 = vpack.c.b16 %v1070, %v1066
        %v1115 = vpack.c.b16 %v1075, %v1071
        %v1116 = vpack.c.b16 %v1076, %v1072
        %v1117 = vpack.c.b16 %v1077, %v1073
        %v1118 = vpack.c.b16 %v1078, %v1074
        %v1119 = vpack.c.b16 %v1083, %v1079
        %v1120 = vpack.c.b16 %v1084, %v1080
        %v1121 = vpack.c.b16 %v1085, %v1081
        %v1122 = vpack.c.b16 %v1086, %v1082
        %v1123 = vpack.c.b16 %v1091, %v1087
        %v1124 = vpack.c.b16 %v1092, %v1088
        %v1125 = vpack.c.b16 %v1093, %v1089
        %v1126 = vpack.c.b16 %v1094, %v1090
        %1159 = vmatpush.bf16.msra.mxu0 %v1123
        %1160 = vmatpush.bf16.msra.mxu0 %v1119
        %1161 = vmatpush.bf16.msra.mxu0 %v1115
        %1162 = vmatpush.bf16.msra.mxu0 %v1111
        %1163 = vmatpush.bf16.msra.mxu0 %v1107
        %1164 = vmatpush.bf16.msra.mxu0 %v1103
        %1165 = vmatpush.bf16.msra.mxu0 %v1099
        %1166 = vmatpush.bf16.msra.mxu0 %v1095
        %1167 = vmatmul.bf16.gmra.mxu0 %v957
        %v1168 = vpop.f32.mrf.mxu0
        %v1169 = vadd.f32 %v991, %v1168
        %v1170 = vpop.f32.mrf.mxu0
        %1171 = vdwg.mxu0
        %1172 = vmatpush.bf16.msra.mxu0 %v1124
        %1173 = vmatpush.bf16.msra.mxu0 %v1120
        %1174 = vmatpush.bf16.msra.mxu0 %v1116
        %1175 = vmatpush.bf16.msra.mxu0 %v1112
        %1176 = vmatpush.bf16.msra.mxu0 %v1108
        %1177 = vmatpush.bf16.msra.mxu0 %v1104
        %1178 = vmatpush.bf16.msra.mxu0 %v1100
        %1179 = vmatpush.bf16.msra.mxu0 %v1096
        %1180 = vmatmul.bf16.gmra.mxu0 %v957
        %v1181 = vpop.f32.mrf.mxu0
        %v1182 = vadd.f32 %v992, %v1181
        %v1183 = vpop.f32.mrf.mxu0
        %1184 = vdwg.mxu0
        %1185 = vmatpush.bf16.msra.mxu0 %v1125
        %1186 = vmatpush.bf16.msra.mxu0 %v1121
        %1187 = vmatpush.bf16.msra.mxu0 %v1117
        %1188 = vmatpush.bf16.msra.mxu0 %v1113
        %1189 = vmatpush.bf16.msra.mxu0 %v1109
        %1190 = vmatpush.bf16.msra.mxu0 %v1105
        %1191 = vmatpush.bf16.msra.mxu0 %v1101
        %1192 = vmatpush.bf16.msra.mxu0 %v1097
        %1193 = vmatmul.bf16.gmra.mxu0 %v957
        %v1194 = vpop.f32.mrf.mxu0
        %v1195 = vadd.f32 %v993, %v1194
        %v1196 = vpop.f32.mrf.mxu0
        %1197 = vdwg.mxu0
        %1198 = vmatpush.bf16.msra.mxu0 %v1126
        %1199 = vmatpush.bf16.msra.mxu0 %v1122
        %1200 = vmatpush.bf16.msra.mxu0 %v1118
        %1201 = vmatpush.bf16.msra.mxu0 %v1114
        %1202 = vmatpush.bf16.msra.mxu0 %v1110
        %1203 = vmatpush.bf16.msra.mxu0 %v1106
        %1204 = vmatpush.bf16.msra.mxu0 %v1102
        %1205 = vmatpush.bf16.msra.mxu0 %v1098
        %1206 = vmatmul.bf16.gmra.mxu0 %v957
        %v1207 = vpop.f32.mrf.mxu0
        %v1208 = vadd.f32 %v994, %v1207
        %v1209 = vpop.f32.mrf.mxu0
        %1210 = vdwg.mxu0
        %v1211 = vmul.f32 %v1169, 0.5
        %v1212 = vmul.f32 %v1182, 0.5
        %v1213 = vmul.f32 %v1195, 0.5
        %v1214 = vmul.f32 %v1208, 0.5
        %v1215 = vmul.f32 %v1169, 0.044715
        %v1216 = vmul.f32 %v1182, 0.044715
        %v1217 = vmul.f32 %v1195, 0.044715
        %v1218 = vmul.f32 %v1208, 0.044715
        %v1219 = vmul.f32 %v1215, %v1169
        %v1220 = vmul.f32 %v1216, %v1182
        %v1221 = vmul.f32 %v1217, %v1195
        %v1222 = vmul.f32 %v1218, %v1208
        %v1223 = vmul.f32 %v1219, %v1169
        %v1224 = vmul.f32 %v1220, %v1182
        %v1225 = vmul.f32 %v1221, %v1195
        %v1226 = vmul.f32 %v1222, %v1208
        %v1227 = vadd.f32 %v1169, %v1223
        %v1228 = vadd.f32 %v1182, %v1224
        %v1229 = vadd.f32 %v1195, %v1225
        %v1230 = vadd.f32 %v1208, %v1226
        %v1231 = vmul.f32 %v1227, 0.7978846
        %v1232 = vmul.f32 %v1228, 0.7978846
        %v1233 = vmul.f32 %v1229, 0.7978846
        %v1234 = vmul.f32 %v1230, 0.7978846
        %v1235 = vtanh.pop %v1231
        %v1236 = vtanh.pop %v1232
        %v1237 = vtanh.pop %v1233
        %v1238 = vtanh.pop %v1234
        %v1239 = vadd.f32 %v1235, 1.0
        %v1240 = vadd.f32 %v1236, 1.0
        %v1241 = vadd.f32 %v1237, 1.0
        %v1242 = vadd.f32 %v1238, 1.0
        %v1243 = vmul.f32 %v1211, %v1239
        %v1244 = vmul.f32 %v1212, %v1240
        %v1245 = vmul.f32 %v1213, %v1241
        %v1246 = vmul.f32 %v1214, %v1242
        %v1247 = vpack.c.bf16 %v1243, %v1243
        %v1248 = vpack.c.bf16 %v1244, %v1244
        %v1249 = vpack.c.bf16 %v1245, %v1245
        %v1250 = vpack.c.bf16 %v1246, %v1246
        %v1251 = vld [vmem:[%s412] sm:$0xf]
        %v1252 = vld [vmem:[%s412 + $0x4] sm:$0xf]
        %v1253 = vld [vmem:[%s412 + $0x8] sm:$0xf]
        %v1254 = vld [vmem:[%s412 + $0xc] sm:$0xf]
        %v1255 = vld [vmem:[%s412 + $0x10] sm:$0xf]
        %v1256 = vld [vmem:[%s412 + $0x14] sm:$0xf]
        %v1257 = vld [vmem:[%s412 + $0x18] sm:$0xf]
        %v1258 = vld [vmem:[%s412 + $0x1c] sm:$0xf]
        %v1259 = vld [vmem:[%s412 + $0x20] sm:$0xf]
        %v1260 = vld [vmem:[%s412 + $0x24] sm:$0xf]
        %v1261 = vld [vmem:[%s412 + $0x28] sm:$0xf]
        %v1262 = vld [vmem:[%s412 + $0x2c] sm:$0xf]
        %v1263 = vld [vmem:[%s412 + $0x30] sm:$0xf]
        %v1264 = vld [vmem:[%s412 + $0x34] sm:$0xf]
        %v1265 = vld [vmem:[%s412 + $0x38] sm:$0xf]
        %v1266 = vld [vmem:[%s412 + $0x3c] sm:$0xf]
        %v1267 = vld [vmem:[%s412 + $0x40] sm:$0xf]
        %v1268 = vld [vmem:[%s412 + $0x44] sm:$0xf]
        %v1269 = vld [vmem:[%s412 + $0x48] sm:$0xf]
        %v1270 = vld [vmem:[%s412 + $0x4c] sm:$0xf]
        %v1271 = vld [vmem:[%s412 + $0x50] sm:$0xf]
        %v1272 = vld [vmem:[%s412 + $0x54] sm:$0xf]
        %v1273 = vld [vmem:[%s412 + $0x58] sm:$0xf]
        %v1274 = vld [vmem:[%s412 + $0x5c] sm:$0xf]
        %v1275 = vld [vmem:[%s412 + $0x60] sm:$0xf]
        %v1276 = vld [vmem:[%s412 + $0x64] sm:$0xf]
        %v1277 = vld [vmem:[%s412 + $0x68] sm:$0xf]
        %v1278 = vld [vmem:[%s412 + $0x6c] sm:$0xf]
        %v1279 = vld [vmem:[%s412 + $0x70] sm:$0xf]
        %v1280 = vld [vmem:[%s412 + $0x74] sm:$0xf]
        %v1281 = vld [vmem:[%s412 + $0x78] sm:$0xf]
        %v1282 = vld [vmem:[%s412 + $0x7c] sm:$0xf]
        %v1283 = vld [vmem:[%s412 + $0x80] sm:$0xf]
        %v1284 = vld [vmem:[%s412 + $0x84] sm:$0xf]
        %v1285 = vld [vmem:[%s412 + $0x88] sm:$0xf]
        %v1286 = vld [vmem:[%s412 + $0x8c] sm:$0xf]
        %v1287 = vld [vmem:[%s412 + $0x90] sm:$0xf]
        %v1288 = vld [vmem:[%s412 + $0x94] sm:$0xf]
        %v1289 = vld [vmem:[%s412 + $0x98] sm:$0xf]
        %v1290 = vld [vmem:[%s412 + $0x9c] sm:$0xf]
        %v1291 = vld [vmem:[%s412 + $0xa0] sm:$0xf]
        %v1292 = vld [vmem:[%s412 + $0xa4] sm:$0xf]
        %v1293 = vld [vmem:[%s412 + $0xa8] sm:$0xf]
        %v1294 = vld [vmem:[%s412 + $0xac] sm:$0xf]
        %v1295 = vld [vmem:[%s412 + $0xb0] sm:$0xf]
        %v1296 = vld [vmem:[%s412 + $0xb4] sm:$0xf]
        %v1297 = vld [vmem:[%s412 + $0xb8] sm:$0xf]
        %v1298 = vld [vmem:[%s412 + $0xbc] sm:$0xf]
        %v1299 = vld [vmem:[%s412 + $0xc0] sm:$0xf]
        %v1300 = vld [vmem:[%s412 + $0xc4] sm:$0xf]
        %v1301 = vld [vmem:[%s412 + $0xc8] sm:$0xf]
        %v1302 = vld [vmem:[%s412 + $0xcc] sm:$0xf]
        %v1303 = vld [vmem:[%s412 + $0xd0] sm:$0xf]
        %v1304 = vld [vmem:[%s412 + $0xd4] sm:$0xf]
        %v1305 = vld [vmem:[%s412 + $0xd8] sm:$0xf]
        %v1306 = vld [vmem:[%s412 + $0xdc] sm:$0xf]
        %v1307 = vld [vmem:[%s412 + $0xe0] sm:$0xf]
        %v1308 = vld [vmem:[%s412 + $0xe4] sm:$0xf]
        %v1309 = vld [vmem:[%s412 + $0xe8] sm:$0xf]
        %v1310 = vld [vmem:[%s412 + $0xec] sm:$0xf]
        %v1311 = vld [vmem:[%s412 + $0xf0] sm:$0xf]
        %v1312 = vld [vmem:[%s412 + $0xf4] sm:$0xf]
        %v1313 = vld [vmem:[%s412 + $0xf8] sm:$0xf]
        %v1314 = vld [vmem:[%s412 + $0xfc] sm:$0xf]
        %v1315 = vperm.slane %v498, 5
        %v1380 = vunpack.c.l.b16 %v1251
        %v1381 = vunpack.c.l.b16 %v1252
        %v1382 = vunpack.c.l.b16 %v1253
        %v1383 = vunpack.c.l.b16 %v1254
        %v1384 = vunpack.c.l.b16 %v1255
        %v1385 = vunpack.c.l.b16 %v1256
        %v1386 = vunpack.c.l.b16 %v1257
        %v1387 = vunpack.c.l.b16 %v1258
        %v1388 = vunpack.c.l.b16 %v1259
        %v1389 = vunpack.c.l.b16 %v1260
        %v1390 = vunpack.c.l.b16 %v1261
        %v1391 = vunpack.c.l.b16 %v1262
        %v1392 = vunpack.c.l.b16 %v1263
        %v1393 = vunpack.c.l.b16 %v1264
        %v1394 = vunpack.c.l.b16 %v1265
        %v1395 = vunpack.c.l.b16 %v1266
        %v1396 = vunpack.c.l.b16 %v1267
        %v1397 = vunpack.c.l.b16 %v1268
        %v1398 = vunpack.c.l.b16 %v1269
        %v1399 = vunpack.c.l.b16 %v1270
        %v1400 = vunpack.c.l.b16 %v1271
        %v1401 = vunpack.c.l.b16 %v1272
        %v1402 = vunpack.c.l.b16 %v1273
        %v1403 = vunpack.c.l.b16 %v1274
        %v1404 = vunpack.c.l.b16 %v1275
        %v1405 = vunpack.c.l.b16 %v1276
        %v1406 = vunpack.c.l.b16 %v1277
        %v1407 = vunpack.c.l.b16 %v1278
        %v1408 = vunpack.c.l.b16 %v1279
        %v1409 = vunpack.c.l.b16 %v1280
        %v1410 = vunpack.c.l.b16 %v1281
        %v1411 = vunpack.c.l.b16 %v1282
        %v1412 = vunpack.c.l.b16 %v1283
        %v1413 = vunpack.c.l.b16 %v1284
        %v1414 = vunpack.c.l.b16 %v1285
        %v1415 = vunpack.c.l.b16 %v1286
        %v1416 = vunpack.c.l.b16 %v1287
        %v1417 = vunpack.c.l.b16 %v1288
        %v1418 = vunpack.c.l.b16 %v1289
        %v1419 = vunpack.c.l.b16 %v1290
        %v1420 = vunpack.c.l.b16 %v1291
        %v1421 = vunpack.c.l.b16 %v1292
        %v1422 = vunpack.c.l.b16 %v1293
        %v1423 = vunpack.c.l.b16 %v1294
        %v1424 = vunpack.c.l.b16 %v1295
        %v1425 = vunpack.c.l.b16 %v1296
        %v1426 = vunpack.c.l.b16 %v1297
        %v1427 = vunpack.c.l.b16 %v1298
        %v1428 = vunpack.c.l.b16 %v1299
        %v1429 = vunpack.c.l.b16 %v1300
        %v1430 = vunpack.c.l.b16 %v1301
        %v1431 = vunpack.c.l.b16 %v1302
        %v1432 = vunpack.c.l.b16 %v1303
        %v1433 = vunpack.c.l.b16 %v1304
        %v1434 = vunpack.c.l.b16 %v1305
        %v1435 = vunpack.c.l.b16 %v1306
        %v1436 = vunpack.c.l.b16 %v1307
        %v1437 = vunpack.c.l.b16 %v1308
        %v1438 = vunpack.c.l.b16 %v1309
        %v1439 = vunpack.c.l.b16 %v1310
        %v1440 = vunpack.c.l.b16 %v1311
        %v1441 = vunpack.c.l.b16 %v1312
        %v1442 = vunpack.c.l.b16 %v1313
        %v1443 = vunpack.c.l.b16 %v1314
        %v1444 = vpack.c.b16 %v1381, %v1380
        %v1445 = vpack.c.b16 %v1383, %v1382
        %v1446 = vpack.c.b16 %v1385, %v1384
        %v1447 = vpack.c.b16 %v1387, %v1386
        %v1448 = vpack.c.b16 %v1389, %v1388
        %v1449 = vpack.c.b16 %v1391, %v1390
        %v1450 = vpack.c.b16 %v1393, %v1392
        %v1451 = vpack.c.b16 %v1395, %v1394
        %v1452 = vpack.c.b16 %v1397, %v1396
        %v1453 = vpack.c.b16 %v1399, %v1398
        %v1454 = vpack.c.b16 %v1401, %v1400
        %v1455 = vpack.c.b16 %v1403, %v1402
        %v1456 = vpack.c.b16 %v1405, %v1404
        %v1457 = vpack.c.b16 %v1407, %v1406
        %v1458 = vpack.c.b16 %v1409, %v1408
        %v1459 = vpack.c.b16 %v1411, %v1410
        %v1460 = vpack.c.b16 %v1413, %v1412
        %v1461 = vpack.c.b16 %v1415, %v1414
        %v1462 = vpack.c.b16 %v1417, %v1416
        %v1463 = vpack.c.b16 %v1419, %v1418
        %v1464 = vpack.c.b16 %v1421, %v1420
        %v1465 = vpack.c.b16 %v1423, %v1422
        %v1466 = vpack.c.b16 %v1425, %v1424
        %v1467 = vpack.c.b16 %v1427, %v1426
        %v1468 = vpack.c.b16 %v1429, %v1428
        %v1469 = vpack.c.b16 %v1431, %v1430
        %v1470 = vpack.c.b16 %v1433, %v1432
        %v1471 = vpack.c.b16 %v1435, %v1434
        %v1472 = vpack.c.b16 %v1437, %v1436
        %v1473 = vpack.c.b16 %v1439, %v1438
        %v1474 = vpack.c.b16 %v1441, %v1440
        %v1475 = vpack.c.b16 %v1443, %v1442
        %1508 = vmatpush.bf16.msra.mxu0 %v1451
        %1509 = vmatpush.bf16.msra.mxu0 %v1450
        %1510 = vmatpush.bf16.msra.mxu0 %v1449
        %1511 = vmatpush.bf16.msra.mxu0 %v1448
        %1512 = vmatpush.bf16.msra.mxu0 %v1447
        %1513 = vmatpush.bf16.msra.mxu0 %v1446
        %1514 = vmatpush.bf16.msra.mxu0 %v1445
        %1515 = vmatpush.bf16.msra.mxu0 %v1444
        %1516 = vmatmul.bf16.gmra.mxu0 %v1247
        %v1517 = vpop.f32.mrf.mxu0
        %v1518 = vadd.f32 %v1315, %v1517
        %v1519 = vpop.f32.mrf.mxu0
        %1520 = vdwg.mxu0
        %1521 = vmatpush.bf16.msra.mxu0 %v1459
        %1522 = vmatpush.bf16.msra.mxu0 %v1458
        %1523 = vmatpush.bf16.msra.mxu0 %v1457
        %1524 = vmatpush.bf16.msra.mxu0 %v1456
        %1525 = vmatpush.bf16.msra.mxu0 %v1455
        %1526 = vmatpush.bf16.msra.mxu0 %v1454
        %1527 = vmatpush.bf16.msra.mxu0 %v1453
        %1528 = vmatpush.bf16.msra.mxu0 %v1452
        %1529 = vmatmul.bf16.gmra.mxu0 %v1248
        %v1530 = vpop.f32.mrf.mxu0
        %v1531 = vadd.f32 %v1518, %v1530
        %v1532 = vpop.f32.mrf.mxu0
        %1533 = vdwg.mxu0
        %1534 = vmatpush.bf16.msra.mxu0 %v1467
        %1535 = vmatpush.bf16.msra.mxu0 %v1466
        %1536 = vmatpush.bf16.msra.mxu0 %v1465
        %1537 = vmatpush.bf16.msra.mxu0 %v1464
        %1538 = vmatpush.bf16.msra.mxu0 %v1463
        %1539 = vmatpush.bf16.msra.mxu0 %v1462
        %1540 = vmatpush.bf16.msra.mxu0 %v1461
        %1541 = vmatpush.bf16.msra.mxu0 %v1460
        %1542 = vmatmul.bf16.gmra.mxu0 %v1249
        %v1543 = vpop.f32.mrf.mxu0
        %v1544 = vadd.f32 %v1531, %v1543
        %v1545 = vpop.f32.mrf.mxu0
        %1546 = vdwg.mxu0
        %1547 = vmatpush.bf16.msra.mxu0 %v1475
        %1548 = vmatpush.bf16.msra.mxu0 %v1474
        %1549 = vmatpush.bf16.msra.mxu0 %v1473
        %1550 = vmatpush.bf16.msra.mxu0 %v1472
        %1551 = vmatpush.bf16.msra.mxu0 %v1471
        %1552 = vmatpush.bf16.msra.mxu0 %v1470
        %1553 = vmatpush.bf16.msra.mxu0 %v1469
        %1554 = vmatpush.bf16.msra.mxu0 %v1468
        %1555 = vmatmul.bf16.gmra.mxu0 %v1250
        %v1556 = vpop.f32.mrf.mxu0
        %v1557 = vadd.f32 %v1544, %v1556
        %v1558 = vpop.f32.mrf.mxu0
        %1559 = vdwg.mxu0
        %v1560 = vadd.f32 %v932, %v1557
        %1561 = vst [vmem:[%s472] sm:$0xff] %v1560
        %p1562 = scmp.eq.s32.totalorder %s33, 1
        // Predicated region
        $region69: #{bert_embedder_forward.1} parent=51 // pred_check
          %p1563 = pneg %p1562
        $region70: #{bert_embedder_forward.1} parent=51 // pred_check_branch
          %1565 = sbr.rel (%p1563) target = $region72
        $region71: #{bert_embedder_forward.1} parent=51 // pred_region
          %v1566 = vld [vmem:[%s7] sm:$0x3]
          %1567 = vadd.xlane.f32.xlu0 %v1560
          %v1568 = vpop.xlane.xlu0 %1567
          %v1569 = vmul.f32 %v1568, %v508
          %v1570 = vsub.f32 %v1560, %v1569
          %v1571 = vmul.f32 %v1570, %v1570
          %1572 = vadd.xlane.f32.xlu0 %v1571
          %v1573 = vpop.xlane.xlu0 %1572
          %v1574 = vmul.f32 %v1573, %v508
          %v1575 = vadd.f32 %v1574, 1e-05
          %v1576 = vrsqrt.pop %v1575
          %v1577 = vmul.f32 %v1576, %v1575
          %v1578 = vmul.f32 %v1577, %v1576
          %v1579 = vmul.f32 0.5, %v1578
          %v1580 = vsub.f32 1.5, %v1579
          %v1581 = vmul.f32 %v1576, %v1580
          %vm1582 = vweird.f32 %v1575
          %vm1583 = vweird.f32 %v1576
          %vm1584 = vmor %vm1582, %vm1583
          %v1585 = vsel %vm1584, %v1576, %v1581
          %v1586 = vmul.f32 %v1570, %v1585
          %v1587 = vperm.slane %v1566, 0
          %v1588 = vmul.f32 %v1586, %v1587
          %v1589 = vperm.slane %v1566, 1
          %v1590 = vadd.f32 %v1588, %v1589
          %1591 = vst [vmem:[%s472] sm:$0xff] %v1590
        $region72: #{bert_embedder_forward.1} parent=51 // pred_fallthru
          _
        %s1592 = sand.u32 %s251, 1
        %s1593 = scalar_lea.sflag [#allocation4], %s1592
        %s1594 = sand.u32 %s251, 1
        %s1595 = smul.addr %s1594, 8
        %s1596 = scalar_lea.vmem [#allocation8], %s1595
        // Predicated region
        $region73: #{bert_embedder_forward.1} parent=51 // pred_check
          %p1597 = pneg %p261
        $region74: #{bert_embedder_forward.1} parent=51 // pred_check_branch
          %1599 = sbr.rel (%p1597) target = $region76
        $region75: #{bert_embedder_forward.1} parent=51 // pred_region
          %1601 = vsyncadd %s1593, 0
          %s1602 = smul.addr %s32, 8
          %s1603 = scalar_lea.hbm %s8, %s1602
          %s1605 = sshll.u32 %s1596, 4
          %s1606 = int_to_ptr.vmem [resolvable:$true] %s1605
          %s1607 = sshll.u32 %s1603, 4
          %s1608 = int_to_ptr.hbm [resolvable:$true] %s1607
          %1610 = dma.vmem_to_hbm [thread:$0]  %s1606, 128, %s1608, %s1593
        $region76: #{bert_embedder_forward.1} parent=51 // pred_fallthru
          _
      $region52: #{bert_embedder_forward.1} parent=5 // pred_fallthru
        _
      %p1611 = scmp.le.s32.totalorder 2, %s23
      // Predicated region
      $region77: #{bert_embedder_forward.1} parent=5 // pred_check
        %p1612 = pneg %p1611
      $region78: #{bert_embedder_forward.1} parent=5 // pred_check_branch
        %1614 = sbr.rel (%p1612) target = $region80
      $region79: #{bert_embedder_forward.1} parent=5 // pred_region
        %s1615 = ssub.s32 %s23, 2
        // Predicated region
        $region81: #{bert_embedder_forward.1} parent=79 // pred_check
          %p1616 = pneg %p267
        $region82: #{bert_embedder_forward.1} parent=79 // pred_check_branch
          %1618 = sbr.rel (%p1616) target = $region84
        $region83: #{bert_embedder_forward.1} parent=79 // pred_region
          %s1619 = sand.u32 %s252, 1
          %s1620 = scalar_lea.sflag [#allocation4], %s1619
          %s1621 = sand.u32 %s252, 1
          %s1622 = smul.addr %s1621, 8
          %s1623 = scalar_lea.vmem [#allocation8], %s1622
          %1625 = dma.done %s1620, 128
        $region84: #{bert_embedder_forward.1} parent=79 // pred_fallthru
          _
      $region80: #{bert_embedder_forward.1} parent=5 // pred_fallthru
        _
    $region6: #{bert_embedder_forward.1} parent=1 // loop_footer
      %s27 = sadd.s32 1, %s23
    $region7: #{bert_embedder_forward.1} parent=1 // loop_footer_branch
      %22 = sbr.rel target = $region3
    $region8: #{bert_embedder_forward.1} parent=1 // loop_exit
      _
    %1626 = vsyncpa [#allocation3], 1
    %s1627 = scalar_lea.sflag [#allocation3], 1
    %1628 = vsyncpa %s1627, 1
    %1629 = vsyncpa [#allocation6], 1
    %s1630 = scalar_lea.sflag [#allocation6], 1
    %1631 = vsyncpa %s1630, 1
    %1632 = vsyncpa [#allocation4], 1
    %s1633 = scalar_lea.sflag [#allocation4], 1
    %1634 = vsyncpa %s1633, 1

</llo_original>
